<compile_context>
chip_gen: v7x
topology: tpu7x:2x2x1
jax: 0.10.0
libtpu: 0.0.40
codegen_flags: <defaults>
</compile_context>

<pallas_src>
import functools

import jax
import jax.numpy as jnp
from jax import lax
from jax.experimental import pallas as pl
from jax.experimental.pallas import tpu as pltpu


def _ot_transport_kernel(
    origin_ref, target_ref,            # bf16 activation blocks
    w_tar_ref, b_tar_ref,              # fused trans_tar -> fc_target
    w_ori2_ref, b_ori2_ref,            # fused trans_ori -> [fc_origin | fc_origin_transport]
    ln_g_ref, ln_b_ref,                # layernorm gamma/beta
    out_ref,
    *, inv_reg, sinkhorn_iters, ln_eps, matmul_dtype,
):
    bt, so, din = origin_ref.shape        # (batch_block, So, Din)
    _, st, _ = target_ref.shape           # (batch_block, St, Din)
    h = w_tar_ref.shape[1]

    # Batch folded into the matmul rows. Inputs are already bf16 (host cast),
    # and So/St are kept multiples of 16 so these flattens are layout no-ops.
    o2 = origin_ref[...].reshape(bt * so, din)
    t2 = target_ref[...].reshape(bt * st, din)

    # Two MXU matmuls per grid step (bf16 x bf16 -> f32 accumulation).
    t_h = jnp.dot(t2, w_tar_ref[...],
                  preferred_element_type=jnp.float32) + b_tar_ref[...]     # (bt*st, h)
    o_proj = jnp.dot(o2, w_ori2_ref[...],
                     preferred_element_type=jnp.float32) + b_ori2_ref[...]  # (bt*so, 2h)
    o_fc = o_proj[:, :h]          # fc_origin(trans_ori(origin))
    o_tr = o_proj[:, h:]          # fc_origin_transport(trans_ori(origin))

    def l2_normalize(x):
        # rsqrt-and-multiply (EUP) instead of sqrt + divide.
        ss = jnp.sum(x * x, axis=-1, keepdims=True)
        return x * lax.rsqrt(jnp.maximum(ss, 1e-24))

    # cosine similarity, batched, contracting last dims (no explicit .T).
    t_hn = l2_normalize(t_h).reshape(bt, st, h)
    o_fn = l2_normalize(o_fc).reshape(bt, so, h)
    C = lax.dot_general(t_hn, o_fn,
                        dimension_numbers=(((2,), (2,)), ((0,), (0,))),
                        preferred_element_type=jnp.float32)                # (bt, st, so)

    # Entropic-OT Sinkhorn (row-first), statically unrolled, all f32.
    # The per-row max shift is exactly absorbed by the first row normalization.
    # Q = exp(.) is strictly positive -> marginals > 0 -> exact divide, no eps.
    S = C * (-inv_reg)
    S = S - jnp.max(S, axis=-1, keepdims=True)
    Q = jnp.exp(S)
    for _ in range(sinkhorn_iters):
        Q = Q / jnp.sum(Q, axis=-1, keepdims=True)   # row normalize (lane reduce)
        Q = Q / jnp.sum(Q, axis=-2, keepdims=True)   # col normalize (sublane reduce)
        # TODO(synk): if a bundle dump shows the XLU slot saturating at
        # production St x So (v6e/v7x have only 2 XLUs), replace the axis=-2
        # sum with an MXU ones-row dot_general and keep only the lane reduce.

    # F.normalize(transport_plan, dim=-1)
    Q = l2_normalize(Q)
    # TODO(synk): nn.Dropout is eval-mode identity here; training-mode mask
    # would use pltpu.prng_seed / pltpu.prng_random_bits.

    # transport_plan @ origin_seq_transport + target_seq  (batched MXU matmul)
    o_tr3 = o_tr.reshape(bt, so, h).astype(matmul_dtype)
    y = lax.dot_general(Q.astype(matmul_dtype), o_tr3,
                        dimension_numbers=(((2,), (1,)), ((0,), (0,))),
                        preferred_element_type=jnp.float32)                # (bt, st, h)
    y = y + t_h.reshape(bt, st, h)

    # LayerNorm over the last dim (rsqrt on the EUP), all f32.
    mu = jnp.mean(y, axis=-1, keepdims=True)
    d = y - mu
    var = jnp.mean(d * d, axis=-1, keepdims=True)
    y = d * lax.rsqrt(var + ln_eps)
    y = y * ln_g_ref[...] + ln_b_ref[...]

    # TODO(synk): lane-dense (>=128-wide) output slab once production H is a
    # multiple of 128; at H=32 the sublane->lane merge would be a per-step
    # relayout, so keep the (bt, st, h) store (bt*st rows per step).
    out_ref[...] = y.astype(out_ref.dtype)


def _tpu_generation_config():
    """Per-generation VMEM budget / grid-depth targets (conservative default)."""
    kind = ""
    try:
        kind = jax.devices()[0].device_kind.lower()
    except Exception:
        pass
    if ("v5" in kind) or ("v6" in kind):
        # 128 MiB physical VMEM parts; 1 TensorCore -> >=2 steps for pipelining.
        return {"vmem_budget": 100 << 20, "min_steps": 2,
                "row_target": 128 if "v5" in kind else 256}
    # v7x (64 MiB VMEM, 2 TCs -> >=2 steps per TC) and anything unrecognized:
    # conservative budget that fits every generation.
    return {"vmem_budget": 48 << 20, "min_steps": 4, "row_target": 256}


def _step_vmem_bytes(bt, So, St, Din, H, in_bytes, out_bytes):
    """Rough per-grid-step VMEM footprint estimate (with compiler slack)."""
    inp = 2 * bt * (So + St) * Din * in_bytes          # double-buffered inputs
    out = 2 * bt * St * H * out_bytes                  # double-buffered output
    inter = 4 * bt * (St * H                            # t_h
                      + So * 2 * H                      # o_proj
                      + 2 * St * So                     # C / Q live ranges
                      + St * H)                         # y
    params = Din * 3 * H * in_bytes + 8 * H * 4
    return int(1.5 * (inp + out + inter)) + params


def _pick_batch_block(B, So, St, Din, H, cfg, in_bytes=2, out_bytes=4):
    divisors = [d for d in range(1, B + 1) if B % d == 0]
    feasible = [d for d in divisors
                if _step_vmem_bytes(d, So, St, Din, H, in_bytes, out_bytes)
                <= cfg["vmem_budget"]] or [1]
    # Keep enough grid steps for pipelining / megacore sharding when possible.
    pool = [d for d in feasible if B // d >= cfg["min_steps"]] or feasible
    # Smallest block that already fills the MXU row target (keeps nb large);
    # otherwise the whole batch is too small -> take the largest feasible.
    good = [d for d in pool if d * min(So, St) >= cfg["row_target"]]
    return min(good) if good else max(pool)


def ot_transport(origin_seq, target_seq, params, *,
                 ot_reg=0.1, sinkhorn_iters=5, ln_eps=1e-5,
                 batch_block=None, matmul_dtype=jnp.bfloat16,
                 out_dtype=jnp.float32):
    B, So, Din = origin_seq.shape
    Bt_, St, Din_t = target_seq.shape
    assert B == Bt_ and Din == Din_t
    H = params["w_tar"].shape[1]

    cfg = _tpu_generation_config()
    if batch_block is None:
        batch_block = _pick_batch_block(B, So, St, Din, H, cfg)
    assert B % batch_block == 0, "pad batch to a multiple of batch_block"
    nb = B // batch_block

    # Host-side algebraic fusion of back-to-back Linears (once per call), with
    # the two origin heads concatenated along the output dim:
    #   fc_target(trans_tar(t))             = t @ (W_tar@W_ftar) + (b_tar@W_ftar + b_ftar)
    #   [fc_origin | fc_origin_tr](trans_ori(o)) = o @ [W_ori@W_fori | W_ori@W_fot] + [...]
    f32 = jnp.float32
    w_tar = (params["w_tar"] @ params["w_ftar"]).astype(matmul_dtype)
    b_tar = (params["b_tar"] @ params["w_ftar"] + params["b_ftar"]).astype(f32)
    w_ori = params["w_ori"] @ params["w_fori"]
    b_ori = params["b_ori"] @ params["w_fori"] + params["b_fori"]
    w_otr = params["w_ori"] @ params["w_fot"]
    b_otr = params["b_ori"] @ params["w_fot"] + params["b_fot"]
    w_ori2 = jnp.concatenate([w_ori, w_otr], axis=1).astype(matmul_dtype)   # (Din, 2H)
    b_ori2 = jnp.concatenate([b_ori, b_otr], axis=1).astype(f32)            # (1, 2H)
    # TODO(synk): on v7x, an fp8 cast of w_tar/w_ori2 (bf16 activations, f32
    # accumulation) is a further MXU/VMEM win; not applicable on v5e/v6e.

    param_arrays = [w_tar, b_tar, w_ori2, b_ori2,
                    params["ln_g"].astype(f32), params["ln_b"].astype(f32)]

    # Host-side bf16 cast of the activations: halves HBM<->VMEM DMA bytes and
    # the double-buffered block footprint; removes the per-step in-kernel cast.
    origin_bf = origin_seq.astype(matmul_dtype)
    target_bf = target_seq.astype(matmul_dtype)

    kernel = functools.partial(
        _ot_transport_kernel,
        inv_reg=float(1.0 / ot_reg),
        sinkhorn_iters=int(sinkhorn_iters),
        ln_eps=float(ln_eps),
        matmul_dtype=matmul_dtype,
    )

    in_specs = [
        pl.BlockSpec((batch_block, So, Din), lambda g: (g, 0, 0)),   # origin (bf16)
        pl.BlockSpec((batch_block, St, Din), lambda g: (g, 0, 0)),   # target (bf16)
    ]
    # Parameters: whole-array VMEM residency, no per-step double buffering.
    in_specs += [pl.BlockSpec(memory_space=pltpu.MemorySpace.VMEM)
                 for _ in param_arrays]

    in_b = jnp.dtype(matmul_dtype).itemsize
    out_b = jnp.dtype(out_dtype).itemsize
    param_bytes = sum(int(a.size) * a.dtype.itemsize for a in param_arrays)
    cost = pl.CostEstimate(
        flops=int(2 * B * (St * Din * H + So * Din * 2 * H + 2 * St * So * H)),
        transcendentals=int(B * (St * So + 2 * St + So + St)),
        bytes_accessed=int(B * (So + St) * Din * in_b
                           + B * St * H * out_b + param_bytes),
    )

    out = pl.pallas_call(
        kernel,
        out_shape=jax.ShapeDtypeStruct((B, St, H), out_dtype),
        grid_spec=pltpu.PrefetchScalarGridSpec(
            num_scalar_prefetch=0,
            grid=(nb,),
            in_specs=in_specs,
            out_specs=pl.BlockSpec((batch_block, St, H), lambda g: (g, 0, 0)),
        ),
        compiler_params=pltpu.CompilerParams(
            dimension_semantics=("parallel",),
            vmem_limit_bytes=int(cfg["vmem_budget"])),
        cost_estimate=cost,
    )(origin_bf, target_bf, *param_arrays)

    return out


def _init_linear(key, fan_in, fan_out):
    # PyTorch nn.Linear default init: U(-1/sqrt(fan_in), 1/sqrt(fan_in));
    # weight stored here as (in, out) so the kernel does x @ W (== x @ W_pt^T).
    kw, kb = jax.random.split(key)
    bound = 1.0 / (fan_in ** 0.5)
    w = jax.random.uniform(kw, (fan_in, fan_out), jnp.float32, -bound, bound)
    b = jax.random.uniform(kb, (1, fan_out), jnp.float32, -bound, bound)
    return w, b


def make_params(key, input_dim, hidden_dim):
    keys = jax.random.split(key, 5)
    p = {}
    p["w_ori"],  p["b_ori"]  = _init_linear(keys[0], input_dim,  hidden_dim)
    p["w_tar"],  p["b_tar"]  = _init_linear(keys[1], input_dim,  hidden_dim)
    p["w_ftar"], p["b_ftar"] = _init_linear(keys[2], hidden_dim, hidden_dim)
    p["w_fori"], p["b_fori"] = _init_linear(keys[3], hidden_dim, hidden_dim)
    p["w_fot"],  p["b_fot"]  = _init_linear(keys[4], hidden_dim, hidden_dim)
    p["ln_g"] = jnp.ones((1, hidden_dim), jnp.float32)   # nn.LayerNorm defaults
    p["ln_b"] = jnp.zeros((1, hidden_dim), jnp.float32)
    return p


if __name__ == "__main__":
    # Small demo shapes; S is a multiple of 16 so the bf16 flatten/splits are
    # layout no-ops, and B is large enough for >=2 grid steps after blocking.
    B, S, INPUT_DIM, HIDDEN_DIM = 8, 16, 64, 32

    root = jax.random.PRNGKey(0)
    k_params, k_o, k_t = jax.random.split(root, 3)

    params = make_params(k_params, INPUT_DIM, HIDDEN_DIM)
    origin_seq = jax.random.normal(k_o, (B, S, INPUT_DIM), jnp.float32)
    target_seq = jax.random.normal(k_t, (B, S, INPUT_DIM), jnp.float32)

    out = ot_transport(origin_seq, target_seq, params,
                       ot_reg=0.1, sinkhorn_iters=5)
    out = jax.block_until_ready(out)

    assert out.shape == (B, S, HIDDEN_DIM)
    assert bool(jnp.all(jnp.isfinite(out)))
    print("KERNEL_OK")
</pallas_src>

<mosaic_0001>
module attributes {stable_mosaic.version = 11 : i64} {
  func.func @_ot_transport_kernel(%arg0: i32, %arg1: memref<2x16x64xbf16, #tpu.memory_space<vmem>>, %arg2: memref<2x16x64xbf16, #tpu.memory_space<vmem>>, %arg3: memref<64x32xbf16, #tpu.memory_space<vmem>>, %arg4: memref<1x32xf32, #tpu.memory_space<vmem>>, %arg5: memref<64x64xbf16, #tpu.memory_space<vmem>>, %arg6: memref<1x64xf32, #tpu.memory_space<vmem>>, %arg7: memref<1x32xf32, #tpu.memory_space<vmem>>, %arg8: memref<1x32xf32, #tpu.memory_space<vmem>>, %arg9: memref<2x16x32xf32, #tpu.memory_space<vmem>>) attributes {dimension_semantics = [#tpu.dimension_semantics<parallel>], iteration_bounds = array<i64: 4>, scalar_prefetch = 0 : i64, scratch_operands = 0 : i64, tpu.core_type = #tpu.core_type<tc>, window_params = [{transform_indices = @transform_0, window_bounds = array<i64: 2, 16, 64>}, {transform_indices = @transform_1, window_bounds = array<i64: 2, 16, 64>}, {pipeline_mode = #tpu.pipeline_mode<synchronous>, transform_indices = @transform_2, window_bounds = array<i64: 64, 32>}, {pipeline_mode = #tpu.pipeline_mode<synchronous>, transform_indices = @transform_3, window_bounds = array<i64: 1, 32>}, {pipeline_mode = #tpu.pipeline_mode<synchronous>, transform_indices = @transform_4, window_bounds = array<i64: 64, 64>}, {pipeline_mode = #tpu.pipeline_mode<synchronous>, transform_indices = @transform_5, window_bounds = array<i64: 1, 64>}, {pipeline_mode = #tpu.pipeline_mode<synchronous>, transform_indices = @transform_6, window_bounds = array<i64: 1, 32>}, {pipeline_mode = #tpu.pipeline_mode<synchronous>, transform_indices = @transform_7, window_bounds = array<i64: 1, 32>}, {transform_indices = @transform_8, window_bounds = array<i64: 2, 16, 32>}]} {
    %c0 = arith.constant 0 : index
    %c0_0 = arith.constant 0 : index
    %c0_1 = arith.constant 0 : index
    %0 = vector.load %arg1[%c0, %c0_0, %c0_1] : memref<2x16x64xbf16, #tpu.memory_space<vmem>>, vector<2x16x64xbf16>
    %1 = vector.shape_cast %0 : vector<2x16x64xbf16> to vector<32x64xbf16>
    %c0_2 = arith.constant 0 : index
    %c0_3 = arith.constant 0 : index
    %c0_4 = arith.constant 0 : index
    %2 = vector.load %arg2[%c0_2, %c0_3, %c0_4] : memref<2x16x64xbf16, #tpu.memory_space<vmem>>, vector<2x16x64xbf16>
    %3 = vector.shape_cast %2 : vector<2x16x64xbf16> to vector<32x64xbf16>
    %c0_5 = arith.constant 0 : index
    %c0_6 = arith.constant 0 : index
    %4 = vector.load %arg3[%c0_5, %c0_6] : memref<64x32xbf16, #tpu.memory_space<vmem>>, vector<64x32xbf16>
    %cst = arith.constant dense<0.000000e+00> : vector<32x32xf32>
    %5 = tpu.matmul %3, %4, %cst {dimension_numbers = #tpu.dot_dimension_numbers<[1], [0], [0], [1], [0, 0, 1, 1], [], []>} : vector<32x64xbf16>, vector<64x32xbf16>, vector<32x32xf32> -> vector<32x32xf32>
    %c0_7 = arith.constant 0 : index
    %c0_8 = arith.constant 0 : index
    %6 = vector.load %arg4[%c0_7, %c0_8] : memref<1x32xf32, #tpu.memory_space<vmem>>, vector<1x32xf32>
    %7 = vector.broadcast %6 : vector<1x32xf32> to vector<32x32xf32>
    %8 = arith.addf %5, %7 : vector<32x32xf32>
    %c0_9 = arith.constant 0 : index
    %c0_10 = arith.constant 0 : index
    %9 = vector.load %arg5[%c0_9, %c0_10] : memref<64x64xbf16, #tpu.memory_space<vmem>>, vector<64x64xbf16>
    %cst_11 = arith.constant dense<0.000000e+00> : vector<32x64xf32>
    %10 = tpu.matmul %1, %9, %cst_11 {dimension_numbers = #tpu.dot_dimension_numbers<[1], [0], [0], [1], [0, 0, 1, 1], [], []>} : vector<32x64xbf16>, vector<64x64xbf16>, vector<32x64xf32> -> vector<32x64xf32>
    %c0_12 = arith.constant 0 : index
    %c0_13 = arith.constant 0 : index
    %11 = vector.load %arg6[%c0_12, %c0_13] : memref<1x64xf32, #tpu.memory_space<vmem>>, vector<1x64xf32>
    %12 = vector.broadcast %11 : vector<1x64xf32> to vector<32x64xf32>
    %13 = arith.addf %10, %12 : vector<32x64xf32>
    %14 = vector.extract_strided_slice %13 {offsets = [0, 0], sizes = [32, 32], strides = [1, 1]} : vector<32x64xf32> to vector<32x32xf32>
    %15 = vector.extract_strided_slice %13 {offsets = [0, 32], sizes = [32, 32], strides = [1, 1]} : vector<32x64xf32> to vector<32x32xf32>
    %16 = arith.mulf %8, %8 : vector<32x32xf32>
    %cst_14 = arith.constant dense<0.000000e+00> : vector<32xf32>
    %17 = vector.multi_reduction <add>, %16, %cst_14 [1] : vector<32x32xf32> to vector<32xf32>
    %18 = vector.shape_cast %17 : vector<32xf32> to vector<32x1xf32>
    %cst_15 = arith.constant 1.000000e-24 : f32
    %19 = vector.broadcast %cst_15 : f32 to vector<32x1xf32>
    %20 = arith.maximumf %18, %19 : vector<32x1xf32>
    %21 = math.rsqrt %20 : vector<32x1xf32>
    %22 = vector.broadcast %21 : vector<32x1xf32> to vector<32x32xf32>
    %23 = arith.mulf %8, %22 : vector<32x32xf32>
    %24 = vector.shape_cast %23 : vector<32x32xf32> to vector<2x16x32xf32>
    %25 = arith.mulf %14, %14 : vector<32x32xf32>
    %cst_16 = arith.constant dense<0.000000e+00> : vector<32xf32>
    %26 = vector.multi_reduction <add>, %25, %cst_16 [1] : vector<32x32xf32> to vector<32xf32>
    %27 = vector.shape_cast %26 : vector<32xf32> to vector<32x1xf32>
    %cst_17 = arith.constant 1.000000e-24 : f32
    %28 = vector.broadcast %cst_17 : f32 to vector<32x1xf32>
    %29 = arith.maximumf %27, %28 : vector<32x1xf32>
    %30 = math.rsqrt %29 : vector<32x1xf32>
    %31 = vector.broadcast %30 : vector<32x1xf32> to vector<32x32xf32>
    %32 = arith.mulf %14, %31 : vector<32x32xf32>
    %33 = vector.shape_cast %32 : vector<32x32xf32> to vector<2x16x32xf32>
    %cst_18 = arith.constant dense<0.000000e+00> : vector<2x16x16xf32>
    %34 = tpu.matmul %24, %33, %cst_18 {dimension_numbers = #tpu.dot_dimension_numbers<[2], [2], [1], [1], [0, 0, 0, 1, 1, 1], [0], [0]>} : vector<2x16x32xf32>, vector<2x16x32xf32>, vector<2x16x16xf32> -> vector<2x16x16xf32>
    %cst_19 = arith.constant -1.000000e+01 : f32
    %35 = vector.broadcast %cst_19 : f32 to vector<2x16x16xf32>
    %36 = arith.mulf %34, %35 : vector<2x16x16xf32>
    %cst_20 = arith.constant dense<0xFF800000> : vector<2x16xf32>
    %37 = vector.multi_reduction <maximumf>, %36, %cst_20 [2] : vector<2x16x16xf32> to vector<2x16xf32>
    %38 = vector.shape_cast %37 : vector<2x16xf32> to vector<2x16x1xf32>
    %39 = vector.broadcast %38 : vector<2x16x1xf32> to vector<2x16x16xf32>
    %40 = arith.subf %36, %39 : vector<2x16x16xf32>
    %41 = math.exp %40 : vector<2x16x16xf32>
    %cst_21 = arith.constant dense<0.000000e+00> : vector<2x16xf32>
    %42 = vector.multi_reduction <add>, %41, %cst_21 [2] : vector<2x16x16xf32> to vector<2x16xf32>
    %43 = vector.shape_cast %42 : vector<2x16xf32> to vector<2x16x1xf32>
    %44 = vector.broadcast %43 : vector<2x16x1xf32> to vector<2x16x16xf32>
    %45 = arith.divf %41, %44 : vector<2x16x16xf32>
    %cst_22 = arith.constant dense<0.000000e+00> : vector<2x16xf32>
    %46 = vector.multi_reduction <add>, %45, %cst_22 [1] : vector<2x16x16xf32> to vector<2x16xf32>
    %47 = vector.shape_cast %46 : vector<2x16xf32> to vector<2x1x16xf32>
    %48 = vector.broadcast %47 : vector<2x1x16xf32> to vector<2x16x16xf32>
    %49 = arith.divf %45, %48 : vector<2x16x16xf32>
    %cst_23 = arith.constant dense<0.000000e+00> : vector<2x16xf32>
    %50 = vector.multi_reduction <add>, %49, %cst_23 [2] : vector<2x16x16xf32> to vector<2x16xf32>
    %51 = vector.shape_cast %50 : vector<2x16xf32> to vector<2x16x1xf32>
    %52 = vector.broadcast %51 : vector<2x16x1xf32> to vector<2x16x16xf32>
    %53 = arith.divf %49, %52 : vector<2x16x16xf32>
    %cst_24 = arith.constant dense<0.000000e+00> : vector<2x16xf32>
    %54 = vector.multi_reduction <add>, %53, %cst_24 [1] : vector<2x16x16xf32> to vector<2x16xf32>
    %55 = vector.shape_cast %54 : vector<2x16xf32> to vector<2x1x16xf32>
    %56 = vector.broadcast %55 : vector<2x1x16xf32> to vector<2x16x16xf32>
    %57 = arith.divf %53, %56 : vector<2x16x16xf32>
    %cst_25 = arith.constant dense<0.000000e+00> : vector<2x16xf32>
    %58 = vector.multi_reduction <add>, %57, %cst_25 [2] : vector<2x16x16xf32> to vector<2x16xf32>
    %59 = vector.shape_cast %58 : vector<2x16xf32> to vector<2x16x1xf32>
    %60 = vector.broadcast %59 : vector<2x16x1xf32> to vector<2x16x16xf32>
    %61 = arith.divf %57, %60 : vector<2x16x16xf32>
    %cst_26 = arith.constant dense<0.000000e+00> : vector<2x16xf32>
    %62 = vector.multi_reduction <add>, %61, %cst_26 [1] : vector<2x16x16xf32> to vector<2x16xf32>
    %63 = vector.shape_cast %62 : vector<2x16xf32> to vector<2x1x16xf32>
    %64 = vector.broadcast %63 : vector<2x1x16xf32> to vector<2x16x16xf32>
    %65 = arith.divf %61, %64 : vector<2x16x16xf32>
    %cst_27 = arith.constant dense<0.000000e+00> : vector<2x16xf32>
    %66 = vector.multi_reduction <add>, %65, %cst_27 [2] : vector<2x16x16xf32> to vector<2x16xf32>
    %67 = vector.shape_cast %66 : vector<2x16xf32> to vector<2x16x1xf32>
    %68 = vector.broadcast %67 : vector<2x16x1xf32> to vector<2x16x16xf32>
    %69 = arith.divf %65, %68 : vector<2x16x16xf32>
    %cst_28 = arith.constant dense<0.000000e+00> : vector<2x16xf32>
    %70 = vector.multi_reduction <add>, %69, %cst_28 [1] : vector<2x16x16xf32> to vector<2x16xf32>
    %71 = vector.shape_cast %70 : vector<2x16xf32> to vector<2x1x16xf32>
    %72 = vector.broadcast %71 : vector<2x1x16xf32> to vector<2x16x16xf32>
    %73 = arith.divf %69, %72 : vector<2x16x16xf32>
    %cst_29 = arith.constant dense<0.000000e+00> : vector<2x16xf32>
    %74 = vector.multi_reduction <add>, %73, %cst_29 [2] : vector<2x16x16xf32> to vector<2x16xf32>
    %75 = vector.shape_cast %74 : vector<2x16xf32> to vector<2x16x1xf32>
    %76 = vector.broadcast %75 : vector<2x16x1xf32> to vector<2x16x16xf32>
    %77 = arith.divf %73, %76 : vector<2x16x16xf32>
    %cst_30 = arith.constant dense<0.000000e+00> : vector<2x16xf32>
    %78 = vector.multi_reduction <add>, %77, %cst_30 [1] : vector<2x16x16xf32> to vector<2x16xf32>
    %79 = vector.shape_cast %78 : vector<2x16xf32> to vector<2x1x16xf32>
    %80 = vector.broadcast %79 : vector<2x1x16xf32> to vector<2x16x16xf32>
    %81 = arith.divf %77, %80 : vector<2x16x16xf32>
    %82 = arith.mulf %81, %81 : vector<2x16x16xf32>
    %cst_31 = arith.constant dense<0.000000e+00> : vector<2x16xf32>
    %83 = vector.multi_reduction <add>, %82, %cst_31 [2] : vector<2x16x16xf32> to vector<2x16xf32>
    %84 = vector.shape_cast %83 : vector<2x16xf32> to vector<2x16x1xf32>
    %cst_32 = arith.constant 1.000000e-24 : f32
    %85 = vector.broadcast %cst_32 : f32 to vector<2x16x1xf32>
    %86 = arith.maximumf %84, %85 : vector<2x16x1xf32>
    %87 = math.rsqrt %86 : vector<2x16x1xf32>
    %88 = vector.broadcast %87 : vector<2x16x1xf32> to vector<2x16x16xf32>
    %89 = arith.mulf %81, %88 : vector<2x16x16xf32>
    %90 = vector.shape_cast %15 : vector<32x32xf32> to vector<2x16x32xf32>
    %91 = arith.truncf %90 : vector<2x16x32xf32> to vector<2x16x32xbf16>
    %92 = arith.truncf %89 : vector<2x16x16xf32> to vector<2x16x16xbf16>
    %cst_33 = arith.constant dense<0.000000e+00> : vector<2x16x32xf32>
    %93 = tpu.matmul %92, %91, %cst_33 {dimension_numbers = #tpu.dot_dimension_numbers<[2], [1], [1], [2], [0, 0, 0, 1, 1, 2], [0], [0]>} : vector<2x16x16xbf16>, vector<2x16x32xbf16>, vector<2x16x32xf32> -> vector<2x16x32xf32>
    %94 = vector.shape_cast %8 : vector<32x32xf32> to vector<2x16x32xf32>
    %95 = arith.addf %93, %94 : vector<2x16x32xf32>
    %cst_34 = arith.constant dense<0.000000e+00> : vector<2x16xf32>
    %96 = vector.multi_reduction <add>, %95, %cst_34 [2] : vector<2x16x32xf32> to vector<2x16xf32>
    %97 = vector.shape_cast %96 : vector<2x16xf32> to vector<2x16x1xf32>
    %cst_35 = arith.constant 3.200000e+01 : f32
    %98 = vector.broadcast %cst_35 : f32 to vector<2x16x1xf32>
    %99 = arith.divf %97, %98 : vector<2x16x1xf32>
    %100 = vector.broadcast %99 : vector<2x16x1xf32> to vector<2x16x32xf32>
    %101 = arith.subf %95, %100 : vector<2x16x32xf32>
    %102 = arith.mulf %101, %101 : vector<2x16x32xf32>
    %cst_36 = arith.constant dense<0.000000e+00> : vector<2x16xf32>
    %103 = vector.multi_reduction <add>, %102, %cst_36 [2] : vector<2x16x32xf32> to vector<2x16xf32>
    %104 = vector.shape_cast %103 : vector<2x16xf32> to vector<2x16x1xf32>
    %cst_37 = arith.constant 3.200000e+01 : f32
    %105 = vector.broadcast %cst_37 : f32 to vector<2x16x1xf32>
    %106 = arith.divf %104, %105 : vector<2x16x1xf32>
    %cst_38 = arith.constant 9.99999974E-6 : f32
    %107 = vector.broadcast %cst_38 : f32 to vector<2x16x1xf32>
    %108 = arith.addf %106, %107 : vector<2x16x1xf32>
    %109 = math.rsqrt %108 : vector<2x16x1xf32>
    %110 = vector.broadcast %109 : vector<2x16x1xf32> to vector<2x16x32xf32>
    %111 = arith.mulf %101, %110 : vector<2x16x32xf32>
    %c0_39 = arith.constant 0 : index
    %c0_40 = arith.constant 0 : index
    %112 = vector.load %arg7[%c0_39, %c0_40] : memref<1x32xf32, #tpu.memory_space<vmem>>, vector<1x32xf32>
    %113 = vector.shape_cast %112 : vector<1x32xf32> to vector<1x1x32xf32>
    %114 = vector.broadcast %113 : vector<1x1x32xf32> to vector<2x16x32xf32>
    %115 = arith.mulf %111, %114 : vector<2x16x32xf32>
    %c0_41 = arith.constant 0 : index
    %c0_42 = arith.constant 0 : index
    %116 = vector.load %arg8[%c0_41, %c0_42] : memref<1x32xf32, #tpu.memory_space<vmem>>, vector<1x32xf32>
    %117 = vector.shape_cast %116 : vector<1x32xf32> to vector<1x1x32xf32>
    %118 = vector.broadcast %117 : vector<1x1x32xf32> to vector<2x16x32xf32>
    %119 = arith.addf %115, %118 : vector<2x16x32xf32>
    %c0_43 = arith.constant 0 : index
    %c0_44 = arith.constant 0 : index
    %c0_45 = arith.constant 0 : index
    %120 = vector.load %arg9[%c0_43, %c0_44, %c0_45] : memref<2x16x32xf32, #tpu.memory_space<vmem>>, vector<2x16x32xf32>
    tpu.vector_store %arg9[%c0_43, %c0_44, %c0_45], %119 {strides = array<i32>} : memref<2x16x32xf32, #tpu.memory_space<vmem>>, vector<2x16x32xf32>,
    return
  }
  func.func @transform_0(%arg0: i32) -> (i32, i32, i32) {
    %c0_i32 = arith.constant 0 : i32
    %c0_i32_0 = arith.constant 0 : i32
    %c0_i32_1 = arith.constant 0 : i32
    return %arg0, %c0_i32, %c0_i32_0 : i32, i32, i32
  }
  func.func @transform_1(%arg0: i32) -> (i32, i32, i32) {
    %c0_i32 = arith.constant 0 : i32
    %c0_i32_0 = arith.constant 0 : i32
    %c0_i32_1 = arith.constant 0 : i32
    return %arg0, %c0_i32, %c0_i32_0 : i32, i32, i32
  }
  func.func @transform_2(%arg0: i32) -> (i32, i32) {
    %c0_i32 = arith.constant 0 : i32
    %c0_i32_0 = arith.constant 0 : i32
    %c0_i32_1 = arith.constant 0 : i32
    return %c0_i32, %c0_i32_0 : i32, i32
  }
  func.func @transform_3(%arg0: i32) -> (i32, i32) {
    %c0_i32 = arith.constant 0 : i32
    %c0_i32_0 = arith.constant 0 : i32
    %c0_i32_1 = arith.constant 0 : i32
    return %c0_i32, %c0_i32_0 : i32, i32
  }
  func.func @transform_4(%arg0: i32) -> (i32, i32) {
    %c0_i32 = arith.constant 0 : i32
    %c0_i32_0 = arith.constant 0 : i32
    %c0_i32_1 = arith.constant 0 : i32
    return %c0_i32, %c0_i32_0 : i32, i32
  }
  func.func @transform_5(%arg0: i32) -> (i32, i32) {
    %c0_i32 = arith.constant 0 : i32
    %c0_i32_0 = arith.constant 0 : i32
    %c0_i32_1 = arith.constant 0 : i32
    return %c0_i32, %c0_i32_0 : i32, i32
  }
  func.func @transform_6(%arg0: i32) -> (i32, i32) {
    %c0_i32 = arith.constant 0 : i32
    %c0_i32_0 = arith.constant 0 : i32
    %c0_i32_1 = arith.constant 0 : i32
    return %c0_i32, %c0_i32_0 : i32, i32
  }
  func.func @transform_7(%arg0: i32) -> (i32, i32) {
    %c0_i32 = arith.constant 0 : i32
    %c0_i32_0 = arith.constant 0 : i32
    %c0_i32_1 = arith.constant 0 : i32
    return %c0_i32, %c0_i32_0 : i32, i32
  }
  func.func @transform_8(%arg0: i32) -> (i32, i32, i32) {
    %c0_i32 = arith.constant 0 : i32
    %c0_i32_0 = arith.constant 0 : i32
    %c0_i32_1 = arith.constant 0 : i32
    return %arg0, %c0_i32, %c0_i32_0 : i32, i32, i32
  }
}

</mosaic_0001>

<llo_original>
// kernel: tpu_custom_call.1
$region0: #{tpu_custom_call.1}
  #allocation0 [shape = 'u32[]', space=smem, size = 0x4, offset = 0x4, fixed_abs, tag = 'smem constant byte address 0x4 - core index']
  #allocation1 [shape = 'u32[144,128]{1,0:T(1,128)}', space=vmem, size = 0x12000, scoped, tag = 'internal scratch']
  %s0 = inlined_call_operand.hbm [shape: bf16[8,16,64], index: 0, kind: input, shape index: {}]
  %s1 = inlined_call_operand.hbm [shape: bf16[8,16,64], index: 1, kind: input, shape index: {}]
  %s2 = inlined_call_operand.vmem [shape: bf16[64,32], index: 2, kind: input, shape index: {}]
  %s3 = inlined_call_operand.vmem [shape: f32[1,32], index: 3, kind: input, shape index: {}]
  %s4 = inlined_call_operand.vmem [shape: bf16[64,64], index: 4, kind: input, shape index: {}]
  %s5 = inlined_call_operand.vmem [shape: f32[1,64], index: 5, kind: input, shape index: {}]
  %s6 = inlined_call_operand.vmem [shape: f32[1,32], index: 6, kind: input, shape index: {}]
  %s7 = inlined_call_operand.vmem [shape: f32[1,32], index: 7, kind: input, shape index: {}]
  %s8 = inlined_call_operand.hbm [shape: f32[8,16,32], index: 8, kind: output, shape index: {}]
  %s9 = sld [smem:[#allocation0]]
  $region73: #{tpu_custom_call.1} parent=0
    _
  %s11 = ssub.s32 1, %s9
  %s12 = scalar_select 0, %s11, %s9
  $region1: #{tpu_custom_call.1} parent=0
    #allocation2 [shape = 'u8[16384]{0}', space=vmem, size = 0x4000, scoped, tag = 'input window, operand 0']
    #allocation3 [shape = 's32[2]{0}', space=sflag, size = 0x8, scoped, tag = 'scoped memory for tpu_custom_call.1']
    #allocation4 [shape = 's32[2]{0}', space=sflag, size = 0x8, scoped, tag = 'scoped memory for tpu_custom_call.1']
    #allocation5 [shape = 'u8[16384]{0}', space=vmem, size = 0x4000, scoped, tag = 'input window, operand 1']
    #allocation6 [shape = 's32[2]{0}', space=sflag, size = 0x8, scoped, tag = 'scoped memory for tpu_custom_call.1']
    #allocation7 [shape = 'u8[32768]{0}', space=vmem, size = 0x8000, scoped, tag = 'output window, operand 0']
    %13 = vsyncpa [#allocation3], 0
    %s14 = scalar_lea.sflag [#allocation3], 1
    %15 = vsyncpa %s14, 0
    %16 = vsyncpa [#allocation6], 0
    %s17 = scalar_lea.sflag [#allocation6], 1
    %18 = vsyncpa %s17, 0
    %19 = vsyncpa [#allocation4], 0
    %s20 = scalar_lea.sflag [#allocation4], 1
    %21 = vsyncpa %s20, 0
    loop: start=0, step=1, limit=6
    $region2: #{tpu_custom_call.1} parent=1 // loop_pre_header
      _
    $region3: #{tpu_custom_call.1} parent=1 // loop_header
      %s23 = sphi 0, %s27
      %p24 = scmp.ge.s32.totalorder %s23, 6
      %s33 = sphi 0, %s35
      %s36 = sphi 0, %s33
      %s37 = sphi 0, %s36
      %s53 = sphi 0, %s37
      %s59 = sphi 0, %s61
      %s62 = sphi 0, %s59
      %s63 = sphi 0, %s62
      %s79 = sphi 0, %s63
      %s83 = sphi 0, %s83
      %s85 = sphi 0, %s83
      %s86 = sphi 0, %s85
      %s100 = sphi 0, %s86
      %s104 = sphi 0, %s104
      %s106 = sphi 0, %s104
      %s107 = sphi 0, %s106
      %s121 = sphi 0, %s107
      %s125 = sphi 0, %s125
      %s127 = sphi 0, %s125
      %s128 = sphi 0, %s127
      %s142 = sphi 0, %s128
      %s146 = sphi 0, %s146
      %s148 = sphi 0, %s146
      %s149 = sphi 0, %s148
      %s163 = sphi 0, %s149
      %s167 = sphi 0, %s167
      %s169 = sphi 0, %s167
      %s170 = sphi 0, %s169
      %s184 = sphi 0, %s170
      %s188 = sphi 0, %s188
      %s190 = sphi 0, %s188
      %s191 = sphi 0, %s190
      %s205 = sphi 0, %s191
      %s211 = sphi 0, %s213
      %s214 = sphi 0, %s211
      %s215 = sphi 0, %s214
      %s231 = sphi 0, %s215
    $region4: #{tpu_custom_call.1} parent=1 // loop_header_branch
      %26 = sbr.rel (%p24) target = $region8
    $region5: #{tpu_custom_call.1} parent=1 // loop_body
      %s28 = ssub.s32 %s23, 1
      %s29 = ssub.s32 %s23, 2
      %s30 = sadd.s32 %s23, 1
      %s31 = ssub.s32 %s23, %s30
      %p32 = scmp.eq.s32.totalorder %s31, 0
      %s34 = sadd.s32 %s33, 1
      %s35 = scalar_select %p32, %s33, %s34
      %p38 = pneg %p32
      %p39 = scmp.eq.s32.totalorder %s23, 3
      %p40 = por %p38, %p39
      %p41 = scmp.ne.s32.totalorder %s33, %s36
      %p42 = scmp.eq.s32.totalorder %s23, 0
      %p43 = por %p41, %p42
      %p44 = scmp.ne.s32.totalorder %s33, %s36
      %p45 = scmp.eq.s32.totalorder %s28, 3
      %p46 = por %p44, %p45
      %p47 = scmp.ne.s32.totalorder %s36, %s37
      %p48 = scmp.eq.s32.totalorder %s28, 0
      %p49 = por %p47, %p48
      %p50 = scmp.ne.s32.totalorder %s36, %s37
      %p51 = scmp.eq.s32.totalorder %s29, 3
      %p52 = por %p50, %p51
      %p54 = scmp.ne.s32.totalorder %s37, %s53
      %p55 = scmp.eq.s32.totalorder %s29, 0
      %p56 = por %p54, %p55
      %s57 = ssub.s32 %s23, %s30
      %p58 = scmp.eq.s32.totalorder %s57, 0
      %s60 = sadd.s32 %s59, 1
      %s61 = scalar_select %p58, %s59, %s60
      %p64 = pneg %p58
      %p65 = scmp.eq.s32.totalorder %s23, 3
      %p66 = por %p64, %p65
      %p67 = scmp.ne.s32.totalorder %s59, %s62
      %p68 = scmp.eq.s32.totalorder %s23, 0
      %p69 = por %p67, %p68
      %p70 = scmp.ne.s32.totalorder %s59, %s62
      %p71 = scmp.eq.s32.totalorder %s28, 3
      %p72 = por %p70, %p71
      %p73 = scmp.ne.s32.totalorder %s62, %s63
      %p74 = scmp.eq.s32.totalorder %s28, 0
      %p75 = por %p73, %p74
      %p76 = scmp.ne.s32.totalorder %s62, %s63
      %p77 = scmp.eq.s32.totalorder %s29, 3
      %p78 = por %p76, %p77
      %p80 = scmp.ne.s32.totalorder %s63, %s79
      %p81 = scmp.eq.s32.totalorder %s29, 0
      %p82 = por %p80, %p81
      %s84 = sadd.s32 %s83, 1
      %p87 = scmp.eq.s32.totalorder %s23, 3
      %p88 = scmp.ne.s32.totalorder %s83, %s85
      %p89 = scmp.eq.s32.totalorder %s23, 0
      %p90 = por %p88, %p89
      %p91 = scmp.ne.s32.totalorder %s83, %s85
      %p92 = scmp.eq.s32.totalorder %s28, 3
      %p93 = por %p91, %p92
      %p94 = scmp.ne.s32.totalorder %s85, %s86
      %p95 = scmp.eq.s32.totalorder %s28, 0
      %p96 = por %p94, %p95
      %p97 = scmp.ne.s32.totalorder %s85, %s86
      %p98 = scmp.eq.s32.totalorder %s29, 3
      %p99 = por %p97, %p98
      %p101 = scmp.ne.s32.totalorder %s86, %s100
      %p102 = scmp.eq.s32.totalorder %s29, 0
      %p103 = por %p101, %p102
      %s105 = sadd.s32 %s104, 1
      %p108 = scmp.eq.s32.totalorder %s23, 3
      %p109 = scmp.ne.s32.totalorder %s104, %s106
      %p110 = scmp.eq.s32.totalorder %s23, 0
      %p111 = por %p109, %p110
      %p112 = scmp.ne.s32.totalorder %s104, %s106
      %p113 = scmp.eq.s32.totalorder %s28, 3
      %p114 = por %p112, %p113
      %p115 = scmp.ne.s32.totalorder %s106, %s107
      %p116 = scmp.eq.s32.totalorder %s28, 0
      %p117 = por %p115, %p116
      %p118 = scmp.ne.s32.totalorder %s106, %s107
      %p119 = scmp.eq.s32.totalorder %s29, 3
      %p120 = por %p118, %p119
      %p122 = scmp.ne.s32.totalorder %s107, %s121
      %p123 = scmp.eq.s32.totalorder %s29, 0
      %p124 = por %p122, %p123
      %s126 = sadd.s32 %s125, 1
      %p129 = scmp.eq.s32.totalorder %s23, 3
      %p130 = scmp.ne.s32.totalorder %s125, %s127
      %p131 = scmp.eq.s32.totalorder %s23, 0
      %p132 = por %p130, %p131
      %p133 = scmp.ne.s32.totalorder %s125, %s127
      %p134 = scmp.eq.s32.totalorder %s28, 3
      %p135 = por %p133, %p134
      %p136 = scmp.ne.s32.totalorder %s127, %s128
      %p137 = scmp.eq.s32.totalorder %s28, 0
      %p138 = por %p136, %p137
      %p139 = scmp.ne.s32.totalorder %s127, %s128
      %p140 = scmp.eq.s32.totalorder %s29, 3
      %p141 = por %p139, %p140
      %p143 = scmp.ne.s32.totalorder %s128, %s142
      %p144 = scmp.eq.s32.totalorder %s29, 0
      %p145 = por %p143, %p144
      %s147 = sadd.s32 %s146, 1
      %p150 = scmp.eq.s32.totalorder %s23, 3
      %p151 = scmp.ne.s32.totalorder %s146, %s148
      %p152 = scmp.eq.s32.totalorder %s23, 0
      %p153 = por %p151, %p152
      %p154 = scmp.ne.s32.totalorder %s146, %s148
      %p155 = scmp.eq.s32.totalorder %s28, 3
      %p156 = por %p154, %p155
      %p157 = scmp.ne.s32.totalorder %s148, %s149
      %p158 = scmp.eq.s32.totalorder %s28, 0
      %p159 = por %p157, %p158
      %p160 = scmp.ne.s32.totalorder %s148, %s149
      %p161 = scmp.eq.s32.totalorder %s29, 3
      %p162 = por %p160, %p161
      %p164 = scmp.ne.s32.totalorder %s149, %s163
      %p165 = scmp.eq.s32.totalorder %s29, 0
      %p166 = por %p164, %p165
      %s168 = sadd.s32 %s167, 1
      %p171 = scmp.eq.s32.totalorder %s23, 3
      %p172 = scmp.ne.s32.totalorder %s167, %s169
      %p173 = scmp.eq.s32.totalorder %s23, 0
      %p174 = por %p172, %p173
      %p175 = scmp.ne.s32.totalorder %s167, %s169
      %p176 = scmp.eq.s32.totalorder %s28, 3
      %p177 = por %p175, %p176
      %p178 = scmp.ne.s32.totalorder %s169, %s170
      %p179 = scmp.eq.s32.totalorder %s28, 0
      %p180 = por %p178, %p179
      %p181 = scmp.ne.s32.totalorder %s169, %s170
      %p182 = scmp.eq.s32.totalorder %s29, 3
      %p183 = por %p181, %p182
      %p185 = scmp.ne.s32.totalorder %s170, %s184
      %p186 = scmp.eq.s32.totalorder %s29, 0
      %p187 = por %p185, %p186
      %s189 = sadd.s32 %s188, 1
      %p192 = scmp.eq.s32.totalorder %s23, 3
      %p193 = scmp.ne.s32.totalorder %s188, %s190
      %p194 = scmp.eq.s32.totalorder %s23, 0
      %p195 = por %p193, %p194
      %p196 = scmp.ne.s32.totalorder %s188, %s190
      %p197 = scmp.eq.s32.totalorder %s28, 3
      %p198 = por %p196, %p197
      %p199 = scmp.ne.s32.totalorder %s190, %s191
      %p200 = scmp.eq.s32.totalorder %s28, 0
      %p201 = por %p199, %p200
      %p202 = scmp.ne.s32.totalorder %s190, %s191
      %p203 = scmp.eq.s32.totalorder %s29, 3
      %p204 = por %p202, %p203
      %p206 = scmp.ne.s32.totalorder %s191, %s205
      %p207 = scmp.eq.s32.totalorder %s29, 0
      %p208 = por %p206, %p207
      %s209 = ssub.s32 %s23, %s30
      %p210 = scmp.eq.s32.totalorder %s209, 0
      %s212 = sadd.s32 %s211, 1
      %s213 = scalar_select %p210, %s211, %s212
      %p216 = pneg %p210
      %p217 = scmp.eq.s32.totalorder %s23, 3
      %p218 = por %p216, %p217
      %p219 = scmp.ne.s32.totalorder %s211, %s214
      %p220 = scmp.eq.s32.totalorder %s23, 0
      %p221 = por %p219, %p220
      %p222 = scmp.ne.s32.totalorder %s211, %s214
      %p223 = scmp.eq.s32.totalorder %s28, 3
      %p224 = por %p222, %p223
      %p225 = scmp.ne.s32.totalorder %s214, %s215
      %p226 = scmp.eq.s32.totalorder %s28, 0
      %p227 = por %p225, %p226
      %p228 = scmp.ne.s32.totalorder %s214, %s215
      %p229 = scmp.eq.s32.totalorder %s29, 3
      %p230 = por %p228, %p229
      %p232 = scmp.ne.s32.totalorder %s215, %s231
      %p233 = scmp.eq.s32.totalorder %s29, 0
      %p234 = por %p232, %p233
      %p235 = scmp.le.s32.totalorder 1, %s23
      %p236 = scmp.lt.s32.totalorder %s23, 5
      %p237 = pnand %p235, %p236
      %p238 = pneg %p237
      // Predicated region
      $region9: #{tpu_custom_call.1} parent=5 // pred_check
        _
      $region10: #{tpu_custom_call.1} parent=5 // pred_check_branch
        %240 = sbr.rel (%p237) target = $region12
      $region11: #{tpu_custom_call.1} parent=5 // pred_region
        %s241 = ssub.s32 %s23, 1
        // Predicated region
        $region13: #{tpu_custom_call.1} parent=11 // pred_check
          %p242 = pneg %p96
        $region14: #{tpu_custom_call.1} parent=11 // pred_check_branch
          %244 = sbr.rel (%p242) target = $region16
        $region15: #{tpu_custom_call.1} parent=11 // pred_region
          _
        $region16: #{tpu_custom_call.1} parent=11 // pred_fallthru
          _
        // Predicated region
        $region17: #{tpu_custom_call.1} parent=11 // pred_check
          %p245 = pneg %p117
        $region18: #{tpu_custom_call.1} parent=11 // pred_check_branch
          %247 = sbr.rel (%p245) target = $region20
        $region19: #{tpu_custom_call.1} parent=11 // pred_region
          _
        $region20: #{tpu_custom_call.1} parent=11 // pred_fallthru
          _
        // Predicated region
        $region21: #{tpu_custom_call.1} parent=11 // pred_check
          %p248 = pneg %p138
        $region22: #{tpu_custom_call.1} parent=11 // pred_check_branch
          %250 = sbr.rel (%p248) target = $region24
        $region23: #{tpu_custom_call.1} parent=11 // pred_region
          _
        $region24: #{tpu_custom_call.1} parent=11 // pred_fallthru
          _
        // Predicated region
        $region25: #{tpu_custom_call.1} parent=11 // pred_check
          %p251 = pneg %p159
        $region26: #{tpu_custom_call.1} parent=11 // pred_check_branch
          %253 = sbr.rel (%p251) target = $region28
        $region27: #{tpu_custom_call.1} parent=11 // pred_region
          _
        $region28: #{tpu_custom_call.1} parent=11 // pred_fallthru
          _
        // Predicated region
        $region29: #{tpu_custom_call.1} parent=11 // pred_check
          %p254 = pneg %p180
        $region30: #{tpu_custom_call.1} parent=11 // pred_check_branch
          %256 = sbr.rel (%p254) target = $region32
        $region31: #{tpu_custom_call.1} parent=11 // pred_region
          _
        $region32: #{tpu_custom_call.1} parent=11 // pred_fallthru
          _
        // Predicated region
        $region33: #{tpu_custom_call.1} parent=11 // pred_check
          %p257 = pneg %p201
        $region34: #{tpu_custom_call.1} parent=11 // pred_check_branch
          %259 = sbr.rel (%p257) target = $region36
        $region35: #{tpu_custom_call.1} parent=11 // pred_region
          _
        $region36: #{tpu_custom_call.1} parent=11 // pred_fallthru
          _
      $region12: #{tpu_custom_call.1} parent=5 // pred_fallthru
        _
      %p260 = scmp.lt.s32.totalorder %s23, 4
      // Predicated region
      $region37: #{tpu_custom_call.1} parent=5 // pred_check
        %p261 = pneg %p260
      $region38: #{tpu_custom_call.1} parent=5 // pred_check_branch
        %263 = sbr.rel (%p261) target = $region40
      $region39: #{tpu_custom_call.1} parent=5 // pred_region
        // Predicated region
        $region41: #{tpu_custom_call.1} parent=39 // pred_check
          %p264 = pneg %p43
        $region42: #{tpu_custom_call.1} parent=39 // pred_check_branch
          %266 = sbr.rel (%p264) target = $region44
        $region43: #{tpu_custom_call.1} parent=39 // pred_region
          %s267 = sand.u32 %s33, 1
          %s268 = scalar_lea.sflag [#allocation3], %s267
          %s269 = sand.u32 %s33, 1
          %s270 = smul.addr %s269, 16
          %s271 = scalar_lea.vmem [#allocation2], %s270
          %s272 = smul.u32 2, %s23
          %s274 = ssub.s32 256, 256
          %275 = vsyncadd %s268, %s274
          %s276 = smul.addr %s272, 2
          %s277 = smul.addr %s276, 64
          %s278 = scalar_lea.hbm %s0, %s277
          %s279 = sshll.u32 %s271, 4
          %s280 = int_to_ptr.vmem [resolvable:$true] %s279
          %285 = dma.hbm_to_vmem [thread:$0]  %s278, 256, %s280, %s268, 64, 64, 4
        $region44: #{tpu_custom_call.1} parent=39 // pred_fallthru
          _
        // Predicated region
        $region45: #{tpu_custom_call.1} parent=39 // pred_check
          %p286 = pneg %p69
        $region46: #{tpu_custom_call.1} parent=39 // pred_check_branch
          %288 = sbr.rel (%p286) target = $region48
        $region47: #{tpu_custom_call.1} parent=39 // pred_region
          %s289 = sand.u32 %s59, 1
          %s290 = scalar_lea.sflag [#allocation6], %s289
          %s291 = sand.u32 %s59, 1
          %s292 = smul.addr %s291, 16
          %s293 = scalar_lea.vmem [#allocation5], %s292
          %s294 = smul.u32 2, %s23
          %s296 = ssub.s32 256, 256
          %297 = vsyncadd %s290, %s296
          %s298 = smul.addr %s294, 2
          %s299 = smul.addr %s298, 64
          %s300 = scalar_lea.hbm %s1, %s299
          %s301 = sshll.u32 %s293, 4
          %s302 = int_to_ptr.vmem [resolvable:$true] %s301
          %307 = dma.hbm_to_vmem [thread:$0]  %s300, 256, %s302, %s290, 64, 64, 4
        $region48: #{tpu_custom_call.1} parent=39 // pred_fallthru
          _
      $region40: #{tpu_custom_call.1} parent=5 // pred_fallthru
        _
      %p308 = scmp.le.s32.totalorder 1, %s23
      %p309 = scmp.lt.s32.totalorder %s23, 5
      %p310 = pnand %p308, %p309
      %p311 = pneg %p310
      // Predicated region
      $region49: #{tpu_custom_call.1} parent=5 // pred_check
        _
      $region50: #{tpu_custom_call.1} parent=5 // pred_check_branch
        %313 = sbr.rel (%p310) target = $region52
      $region51: #{tpu_custom_call.1} parent=5 // pred_region
        %s314 = ssub.s32 %s23, 1
        %s315 = sand.u32 %s36, 1
        %s316 = scalar_lea.sflag [#allocation3], %s315
        %s317 = sand.u32 %s36, 1
        %s318 = smul.addr %s317, 16
        %s319 = scalar_lea.vmem [#allocation2], %s318
        // Predicated region
        $region53: #{tpu_custom_call.1} parent=51 // pred_check
          %p320 = pneg %p49
        $region54: #{tpu_custom_call.1} parent=51 // pred_check_branch
          %322 = sbr.rel (%p320) target = $region56
        $region55: #{tpu_custom_call.1} parent=51 // pred_region
          %323 = dma.done %s316, 256
        $region56: #{tpu_custom_call.1} parent=51 // pred_fallthru
          _
        %s324 = sand.u32 %s62, 1
        %s325 = scalar_lea.sflag [#allocation6], %s324
        %s326 = sand.u32 %s62, 1
        %s327 = smul.addr %s326, 16
        %s328 = scalar_lea.vmem [#allocation5], %s327
        // Predicated region
        $region57: #{tpu_custom_call.1} parent=51 // pred_check
          %p329 = pneg %p75
        $region58: #{tpu_custom_call.1} parent=51 // pred_check_branch
          %331 = sbr.rel (%p329) target = $region60
        $region59: #{tpu_custom_call.1} parent=51 // pred_region
          %332 = dma.done %s325, 256
        $region60: #{tpu_custom_call.1} parent=51 // pred_fallthru
          _
        %s333 = sand.u32 %s36, 1
        %s334 = scalar_lea.sflag [#allocation3], %s333
        %s335 = sand.u32 %s36, 1
        %s336 = smul.addr %s335, 16
        %s337 = scalar_lea.vmem [#allocation2], %s336
        %p338 = pneg %p49
        %p339 = pneg %p46
        %s340 = sand.u32 %s62, 1
        %s341 = scalar_lea.sflag [#allocation6], %s340
        %s342 = sand.u32 %s62, 1
        %s343 = smul.addr %s342, 16
        %s344 = scalar_lea.vmem [#allocation5], %s343
        %p345 = pneg %p75
        %p346 = pneg %p72
        %p347 = pneg %p96
        %p348 = pneg %p93
        %p349 = pneg %p117
        %p350 = pneg %p114
        %p351 = pneg %p138
        %p352 = pneg %p135
        %p353 = pneg %p159
        %p354 = pneg %p156
        %p355 = pneg %p180
        %p356 = pneg %p177
        %p357 = pneg %p201
        %p358 = pneg %p198
        %p359 = pneg %p227
        %p360 = pneg %p224
        %s361 = sand.u32 %s214, 1
        %s362 = scalar_lea.sflag [#allocation4], %s361
        %s363 = sand.u32 %s214, 1
        %s364 = smul.addr %s363, 32
        %s365 = scalar_lea.vmem [#allocation7], %s364
        %s366 = smul.u32 2, %s28
        %s367 = smul.u32 2, %s28
        %s368 = smul.u32 2, %s28
        %v370 = vld [vmem:[%s319] sm:$0xf]
        %v371 = vld [vmem:[%s319 + $0x4] sm:$0xf]
        %v372 = vld [vmem:[%s319 + $0x8] sm:$0xf]
        %v373 = vld [vmem:[%s319 + $0xc] sm:$0xf]
        %v374 = vld [vmem:[%s328] sm:$0xf]
        %v375 = vld [vmem:[%s328 + $0x4] sm:$0xf]
        %v376 = vld [vmem:[%s328 + $0x8] sm:$0xf]
        %v377 = vld [vmem:[%s328 + $0xc] sm:$0xf]
        %v378 = vld [vmem:[%s2] sm:$0xf]
        %v379 = vld [vmem:[%s2 + $0x4] sm:$0xf]
        %v380 = vld [vmem:[%s2 + $0x8] sm:$0xf]
        %v381 = vld [vmem:[%s2 + $0xc] sm:$0xf]
        %v382 = vld [vmem:[%s2 + $0x10] sm:$0xf]
        %v383 = vld [vmem:[%s2 + $0x14] sm:$0xf]
        %v384 = vld [vmem:[%s2 + $0x18] sm:$0xf]
        %v385 = vld [vmem:[%s2 + $0x1c] sm:$0xf]
        %v386 = vld [vmem:[%s3] sm:$0x1]
        %v388 = vlaneseq
        %v389 = vshrl.u32 %v388, 7
        %v390 = vsub.s32 0, %v389
        %v391 = vrot.slane %v386, %v390
        %v397 = vunpack.c.l.b16 %v374
        %v398 = vunpack.c.l.b16 %v375
        %v399 = vunpack.c.l.b16 %v376
        %v400 = vunpack.c.l.b16 %v377
        %v401 = vpack.c.b16 %v398, %v397
        %v402 = vpack.c.b16 %v400, %v399
        %v411 = vunpack.c.l.b16 %v378
        %v412 = vunpack.c.l.b16 %v379
        %v413 = vunpack.c.l.b16 %v380
        %v414 = vunpack.c.l.b16 %v381
        %v415 = vunpack.c.l.b16 %v382
        %v416 = vunpack.c.l.b16 %v383
        %v417 = vunpack.c.l.b16 %v384
        %v418 = vunpack.c.l.b16 %v385
        %v419 = vpack.c.b16 %v412, %v411
        %v420 = vpack.c.b16 %v414, %v413
        %v421 = vpack.c.b16 %v416, %v415
        %v422 = vpack.c.b16 %v418, %v417
        %vm427 = vcmask 523264
        %v429 = vsel %vm427, %v401, 0
        %v432 = vsel %vm427, %v402, 0
        %434 = vmatprep.subr.bf16.mxu0 0
        %435 = vmatpush1.bf16.msra.mxu0 %v419
        %436 = vmatprep.subr.bf16.mxu0 0
        %437 = vmatpush1.bf16.msra.mxu0 %v420
        %438 = vmatprep.subr.bf16.mxu0 0
        %439 = vmatpush1.bf16.msra.mxu0 %v421
        %440 = vmatprep.subr.bf16.mxu0 0
        %441 = vmatpush1.bf16.msra.mxu0 %v422
        %442 = vmatprep.subr.bf16.mxu0 0
        %443 = vmatpush1.bf16.msra.mxu0 0
        %444 = vmatprep.subr.bf16.mxu0 0
        %445 = vmatpush1.bf16.msra.mxu0 0
        %446 = vmatprep.subr.bf16.mxu0 0
        %447 = vmatpush1.bf16.msra.mxu0 0
        %448 = vmatprep.subr.bf16.mxu0 0
        %449 = vmatpush1.bf16.msra.mxu0 0
        %450 = vmatprep.subr.bf16.mxu0 0
        %451 = vmatpush1.bf16.msra.mxu0 0
        %452 = vmatprep.subr.bf16.mxu0 0
        %453 = vmatpush1.bf16.msra.mxu0 0
        %454 = vmatprep.subr.bf16.mxu0 0
        %455 = vmatpush1.bf16.msra.mxu0 0
        %456 = vmatprep.subr.bf16.mxu0 0
        %457 = vmatpush1.bf16.msra.mxu0 0
        %458 = vmatprep.subr.bf16.mxu0 0
        %459 = vmatpush1.bf16.msra.mxu0 0
        %460 = vmatprep.subr.bf16.mxu0 0
        %461 = vmatpush1.bf16.msra.mxu0 0
        %462 = vmatprep.subr.bf16.mxu0 0
        %463 = vmatpush1.bf16.msra.mxu0 0
        %464 = vmatprep.subr.bf16.mxu0 0
        %465 = vmatpush1.bf16.msra.mxu0 0
        %466 = vmatprep.mubr.bf16.mxu0 0
        %467 = vmatmul.mubr.bf16.gmra.mrb[0].mxu0 %v429
        %v468 = vpop.f32.mrb[0].mxu0
        %v469 = vadd.f32 %v391, %v468
        %v470 = vpop.f32.mrb[0].mxu0
        %v471 = vpop.f32.mrb[0].mxu0
        %v472 = vadd.f32 %v391, %v471
        %v473 = vpop.f32.mrb[0].mxu0
        %474 = vmatprep.mubr.bf16.mxu0 0
        %475 = vmatmul.mubr.bf16.gmra.mrb[0].mxu0 %v432
        %v476 = vpop.f32.mrb[0].mxu0
        %v477 = vadd.f32 %v391, %v476
        %v478 = vpop.f32.mrb[0].mxu0
        %v479 = vpop.f32.mrb[0].mxu0
        %v480 = vadd.f32 %v391, %v479
        %v481 = vpop.f32.mrb[0].mxu0
        %482 = vdwg.mxu0
        %v483 = vld [vmem:[%s4] sm:$0xf]
        %v484 = vld [vmem:[%s4 + $0x4] sm:$0xf]
        %v485 = vld [vmem:[%s4 + $0x8] sm:$0xf]
        %v486 = vld [vmem:[%s4 + $0xc] sm:$0xf]
        %v487 = vld [vmem:[%s4 + $0x10] sm:$0xf]
        %v488 = vld [vmem:[%s4 + $0x14] sm:$0xf]
        %v489 = vld [vmem:[%s4 + $0x18] sm:$0xf]
        %v490 = vld [vmem:[%s4 + $0x1c] sm:$0xf]
        %v491 = vld [vmem:[%s5] sm:$0x1]
        %v493 = vlaneseq
        %v494 = vshrl.u32 %v493, 7
        %v495 = vsub.s32 0, %v494
        %v496 = vrot.slane %v491, %v495
        %v502 = vunpack.c.l.b16 %v370
        %v503 = vunpack.c.l.b16 %v371
        %v504 = vunpack.c.l.b16 %v372
        %v505 = vunpack.c.l.b16 %v373
        %v506 = vpack.c.b16 %v503, %v502
        %v507 = vpack.c.b16 %v505, %v504
        %v516 = vunpack.c.l.b16 %v483
        %v517 = vunpack.c.l.b16 %v484
        %v518 = vunpack.c.l.b16 %v485
        %v519 = vunpack.c.l.b16 %v486
        %v520 = vunpack.c.l.b16 %v487
        %v521 = vunpack.c.l.b16 %v488
        %v522 = vunpack.c.l.b16 %v489
        %v523 = vunpack.c.l.b16 %v490
        %v524 = vpack.c.b16 %v517, %v516
        %v525 = vpack.c.b16 %v519, %v518
        %v526 = vpack.c.b16 %v521, %v520
        %v527 = vpack.c.b16 %v523, %v522
        %v533 = vsel %vm427, %v506, 0
        %v536 = vsel %vm427, %v507, 0
        %538 = vmatprep.subr.bf16.mxu0 0
        %539 = vmatpush1.bf16.msra.mxu0 %v524
        %540 = vmatprep.subr.bf16.mxu0 0
        %541 = vmatpush1.bf16.msra.mxu0 %v525
        %542 = vmatprep.subr.bf16.mxu0 0
        %543 = vmatpush1.bf16.msra.mxu0 %v526
        %544 = vmatprep.subr.bf16.mxu0 0
        %545 = vmatpush1.bf16.msra.mxu0 %v527
        %546 = vmatprep.subr.bf16.mxu0 0
        %547 = vmatpush1.bf16.msra.mxu0 0
        %548 = vmatprep.subr.bf16.mxu0 0
        %549 = vmatpush1.bf16.msra.mxu0 0
        %550 = vmatprep.subr.bf16.mxu0 0
        %551 = vmatpush1.bf16.msra.mxu0 0
        %552 = vmatprep.subr.bf16.mxu0 0
        %553 = vmatpush1.bf16.msra.mxu0 0
        %554 = vmatprep.subr.bf16.mxu0 0
        %555 = vmatpush1.bf16.msra.mxu0 0
        %556 = vmatprep.subr.bf16.mxu0 0
        %557 = vmatpush1.bf16.msra.mxu0 0
        %558 = vmatprep.subr.bf16.mxu0 0
        %559 = vmatpush1.bf16.msra.mxu0 0
        %560 = vmatprep.subr.bf16.mxu0 0
        %561 = vmatpush1.bf16.msra.mxu0 0
        %562 = vmatprep.subr.bf16.mxu0 0
        %563 = vmatpush1.bf16.msra.mxu0 0
        %564 = vmatprep.subr.bf16.mxu0 0
        %565 = vmatpush1.bf16.msra.mxu0 0
        %566 = vmatprep.subr.bf16.mxu0 0
        %567 = vmatpush1.bf16.msra.mxu0 0
        %568 = vmatprep.subr.bf16.mxu0 0
        %569 = vmatpush1.bf16.msra.mxu0 0
        %570 = vmatprep.mubr.bf16.mxu0 0
        %571 = vmatmul.mubr.bf16.gmra.mrb[0].mxu0 %v533
        %v572 = vpop.f32.mrb[0].mxu0
        %v573 = vadd.f32 %v496, %v572
        %v574 = vpop.f32.mrb[0].mxu0
        %v575 = vpop.f32.mrb[0].mxu0
        %v576 = vadd.f32 %v496, %v575
        %v577 = vpop.f32.mrb[0].mxu0
        %578 = vmatprep.mubr.bf16.mxu0 0
        %579 = vmatmul.mubr.bf16.gmra.mrb[0].mxu0 %v536
        %v580 = vpop.f32.mrb[0].mxu0
        %v581 = vadd.f32 %v496, %v580
        %v582 = vpop.f32.mrb[0].mxu0
        %v583 = vpop.f32.mrb[0].mxu0
        %v584 = vadd.f32 %v496, %v583
        %v585 = vpop.f32.mrb[0].mxu0
        %586 = vdwg.mxu0
        %v587 = vmul.f32 %v469, %v469
        %v588 = vmul.f32 %v472, %v472
        %v589 = vmul.f32 %v477, %v477
        %v590 = vmul.f32 %v480, %v480
        %vm591 = vcmask 261120
        %v592 = vsel %vm591, %v587, 0.0
        %593 = vadd.xlane.f32.xlu0 %v592
        %v594 = vpop.xlane.xlu0 %593
        %v595 = vsel %vm591, %v588, 0.0
        %596 = vadd.xlane.f32.xlu0 %v595
        %v597 = vpop.xlane.xlu0 %596
        %v598 = vsel %vm591, %v589, 0.0
        %599 = vadd.xlane.f32.xlu0 %v598
        %v600 = vpop.xlane.xlu0 %599
        %v601 = vsel %vm591, %v590, 0.0
        %602 = vadd.xlane.f32.xlu0 %v601
        %v603 = vpop.xlane.xlu0 %602
        %v604 = vmax.f32 %v594, 1e-24
        %v605 = vmax.f32 %v597, 1e-24
        %v606 = vmax.f32 %v600, 1e-24
        %v607 = vmax.f32 %v603, 1e-24
        %v608 = vrsqrt.pop %v604
        %v609 = vrsqrt.pop %v605
        %v610 = vrsqrt.pop %v606
        %v611 = vrsqrt.pop %v607
        %v612 = vmul.f32 %v469, %v608
        %v613 = vmul.f32 %v472, %v609
        %v614 = vmul.f32 %v477, %v610
        %v615 = vmul.f32 %v480, %v611
        %v616 = vmul.f32 %v573, %v573
        %v617 = vmul.f32 %v576, %v576
        %v618 = vmul.f32 %v581, %v581
        %v619 = vmul.f32 %v584, %v584
        %v620 = vsel %vm591, %v616, 0.0
        %621 = vadd.xlane.f32.xlu0 %v620
        %v622 = vpop.xlane.xlu0 %621
        %v623 = vsel %vm591, %v617, 0.0
        %624 = vadd.xlane.f32.xlu0 %v623
        %v625 = vpop.xlane.xlu0 %624
        %v626 = vsel %vm591, %v618, 0.0
        %627 = vadd.xlane.f32.xlu0 %v626
        %v628 = vpop.xlane.xlu0 %627
        %v629 = vsel %vm591, %v619, 0.0
        %630 = vadd.xlane.f32.xlu0 %v629
        %v631 = vpop.xlane.xlu0 %630
        %v632 = vmax.f32 %v622, 1e-24
        %v633 = vmax.f32 %v625, 1e-24
        %v634 = vmax.f32 %v628, 1e-24
        %v635 = vmax.f32 %v631, 1e-24
        %v636 = vrsqrt.pop %v632
        %v637 = vrsqrt.pop %v633
        %v638 = vrsqrt.pop %v634
        %v639 = vrsqrt.pop %v635
        %v640 = vmul.f32 %v573, %v636
        %v641 = vmul.f32 %v576, %v637
        %v642 = vmul.f32 %v581, %v638
        %v643 = vmul.f32 %v584, %v639
        %v645 = vsel %vm591, %v612, 0
        %v648 = vsel %vm591, %v613, 0
        %v651 = vsel %vm591, %v640, 0
        %v654 = vsel %vm591, %v641, 0
        %656 = vmatprep.subr.mxu0 0.0
        %657 = vmatpush1.xpose.msra.mxu0 %v651
        %658 = vmatprep.subr.mxu0 0.0
        %659 = vmatpush1.xpose.msra.mxu0 %v654
        %660 = vmatprep.subr.mxu0 0.0
        %661 = vmatpush1.xpose.msra.mxu0 0.0
        %662 = vmatprep.subr.mxu0 0.0
        %663 = vmatpush1.xpose.msra.mxu0 0.0
        %664 = vmatprep.subr.mxu0 0.0
        %665 = vmatpush1.xpose.msra.mxu0 0.0
        %666 = vmatprep.subr.mxu0 0.0
        %667 = vmatpush1.xpose.msra.mxu0 0.0
        %668 = vmatprep.subr.mxu0 0.0
        %669 = vmatpush1.xpose.msra.mxu0 0.0
        %670 = vmatprep.subr.mxu0 0.0
        %671 = vmatpush1.xpose.msra.mxu0 0.0
        %672 = vmatprep.subr.mxu0 0.0
        %673 = vmatpush1.xpose.msra.mxu0 0.0
        %674 = vmatprep.subr.mxu0 0.0
        %675 = vmatpush1.xpose.msra.mxu0 0.0
        %676 = vmatprep.subr.mxu0 0.0
        %677 = vmatpush1.xpose.msra.mxu0 0.0
        %678 = vmatprep.subr.mxu0 0.0
        %679 = vmatpush1.xpose.msra.mxu0 0.0
        %680 = vmatprep.subr.mxu0 0.0
        %681 = vmatpush1.xpose.msra.mxu0 0.0
        %682 = vmatprep.subr.mxu0 0.0
        %683 = vmatpush1.xpose.msra.mxu0 0.0
        %684 = vmatprep.subr.mxu0 0.0
        %685 = vmatpush1.xpose.msra.mxu0 0.0
        %686 = vmatprep.subr.mxu0 0.0
        %687 = vmatpush1.xpose.msra.mxu0 0.0
        %688 = vmatprep.subr.mxu0 0.0
        %689 = vmatpush1.xpose.msra.mxu0 0.0
        %690 = vmatprep.subr.mxu0 0.0
        %691 = vmatpush1.xpose.msra.mxu0 0.0
        %692 = vmatprep.subr.mxu0 0.0
        %693 = vmatpush1.xpose.msra.mxu0 0.0
        %694 = vmatprep.subr.mxu0 0.0
        %695 = vmatpush1.xpose.msra.mxu0 0.0
        %696 = vmatprep.subr.mxu0 0.0
        %697 = vmatpush1.xpose.msra.mxu0 0.0
        %698 = vmatprep.subr.mxu0 0.0
        %699 = vmatpush1.xpose.msra.mxu0 0.0
        %700 = vmatprep.subr.mxu0 0.0
        %701 = vmatpush1.xpose.msra.mxu0 0.0
        %702 = vmatprep.subr.mxu0 0.0
        %703 = vmatpush1.xpose.msra.mxu0 0.0
        %704 = vmatprep.subr.mxu0 0.0
        %705 = vmatpush1.xpose.msra.mxu0 0.0
        %706 = vmatprep.subr.mxu0 0.0
        %707 = vmatpush1.xpose.msra.mxu0 0.0
        %708 = vmatprep.subr.mxu0 0.0
        %709 = vmatpush1.xpose.msra.mxu0 0.0
        %710 = vmatprep.subr.mxu0 0.0
        %711 = vmatpush1.xpose.msra.mxu0 0.0
        %712 = vmatprep.subr.mxu0 0.0
        %713 = vmatpush1.xpose.msra.mxu0 0.0
        %714 = vmatprep.subr.mxu0 0.0
        %715 = vmatpush1.xpose.msra.mxu0 0.0
        %716 = vmatprep.subr.mxu0 0.0
        %717 = vmatpush1.xpose.msra.mxu0 0.0
        %718 = vmatprep.subr.mxu0 0.0
        %719 = vmatpush1.xpose.msra.mxu0 0.0
        %720 = vmatprep.mubr.f32.mxu0 0.0
        %721 = vmatmul.mubr.f32.gmra.mrb[0].mxu0 %v645
        %v722 = vpop.f32.mrb[0].mxu0
        %v723 = vadd.f32 0.0, %v722
        %v724 = vpop.f32.mrb[0].mxu0
        %725 = vmatprep.mubr.f32.mxu0 0.0
        %726 = vmatmul.mubr.f32.gmra.mrb[0].mxu0 %v648
        %v727 = vpop.f32.mrb[0].mxu0
        %v728 = vadd.f32 0.0, %v727
        %v729 = vpop.f32.mrb[0].mxu0
        %730 = vdwg.mxu0
        %v732 = vsel %vm591, %v614, 0
        %v735 = vsel %vm591, %v615, 0
        %v738 = vsel %vm591, %v642, 0
        %v741 = vsel %vm591, %v643, 0
        %743 = vmatprep.subr.mxu0 0.0
        %744 = vmatpush1.xpose.msra.mxu0 %v738
        %745 = vmatprep.subr.mxu0 0.0
        %746 = vmatpush1.xpose.msra.mxu0 %v741
        %747 = vmatprep.subr.mxu0 0.0
        %748 = vmatpush1.xpose.msra.mxu0 0.0
        %749 = vmatprep.subr.mxu0 0.0
        %750 = vmatpush1.xpose.msra.mxu0 0.0
        %751 = vmatprep.subr.mxu0 0.0
        %752 = vmatpush1.xpose.msra.mxu0 0.0
        %753 = vmatprep.subr.mxu0 0.0
        %754 = vmatpush1.xpose.msra.mxu0 0.0
        %755 = vmatprep.subr.mxu0 0.0
        %756 = vmatpush1.xpose.msra.mxu0 0.0
        %757 = vmatprep.subr.mxu0 0.0
        %758 = vmatpush1.xpose.msra.mxu0 0.0
        %759 = vmatprep.subr.mxu0 0.0
        %760 = vmatpush1.xpose.msra.mxu0 0.0
        %761 = vmatprep.subr.mxu0 0.0
        %762 = vmatpush1.xpose.msra.mxu0 0.0
        %763 = vmatprep.subr.mxu0 0.0
        %764 = vmatpush1.xpose.msra.mxu0 0.0
        %765 = vmatprep.subr.mxu0 0.0
        %766 = vmatpush1.xpose.msra.mxu0 0.0
        %767 = vmatprep.subr.mxu0 0.0
        %768 = vmatpush1.xpose.msra.mxu0 0.0
        %769 = vmatprep.subr.mxu0 0.0
        %770 = vmatpush1.xpose.msra.mxu0 0.0
        %771 = vmatprep.subr.mxu0 0.0
        %772 = vmatpush1.xpose.msra.mxu0 0.0
        %773 = vmatprep.subr.mxu0 0.0
        %774 = vmatpush1.xpose.msra.mxu0 0.0
        %775 = vmatprep.subr.mxu0 0.0
        %776 = vmatpush1.xpose.msra.mxu0 0.0
        %777 = vmatprep.subr.mxu0 0.0
        %778 = vmatpush1.xpose.msra.mxu0 0.0
        %779 = vmatprep.subr.mxu0 0.0
        %780 = vmatpush1.xpose.msra.mxu0 0.0
        %781 = vmatprep.subr.mxu0 0.0
        %782 = vmatpush1.xpose.msra.mxu0 0.0
        %783 = vmatprep.subr.mxu0 0.0
        %784 = vmatpush1.xpose.msra.mxu0 0.0
        %785 = vmatprep.subr.mxu0 0.0
        %786 = vmatpush1.xpose.msra.mxu0 0.0
        %787 = vmatprep.subr.mxu0 0.0
        %788 = vmatpush1.xpose.msra.mxu0 0.0
        %789 = vmatprep.subr.mxu0 0.0
        %790 = vmatpush1.xpose.msra.mxu0 0.0
        %791 = vmatprep.subr.mxu0 0.0
        %792 = vmatpush1.xpose.msra.mxu0 0.0
        %793 = vmatprep.subr.mxu0 0.0
        %794 = vmatpush1.xpose.msra.mxu0 0.0
        %795 = vmatprep.subr.mxu0 0.0
        %796 = vmatpush1.xpose.msra.mxu0 0.0
        %797 = vmatprep.subr.mxu0 0.0
        %798 = vmatpush1.xpose.msra.mxu0 0.0
        %799 = vmatprep.subr.mxu0 0.0
        %800 = vmatpush1.xpose.msra.mxu0 0.0
        %801 = vmatprep.subr.mxu0 0.0
        %802 = vmatpush1.xpose.msra.mxu0 0.0
        %803 = vmatprep.subr.mxu0 0.0
        %804 = vmatpush1.xpose.msra.mxu0 0.0
        %805 = vmatprep.subr.mxu0 0.0
        %806 = vmatpush1.xpose.msra.mxu0 0.0
        %807 = vmatprep.mubr.f32.mxu0 0.0
        %808 = vmatmul.mubr.f32.gmra.mrb[0].mxu0 %v732
        %v809 = vpop.f32.mrb[0].mxu0
        %v810 = vadd.f32 0.0, %v809
        %v811 = vpop.f32.mrb[0].mxu0
        %812 = vmatprep.mubr.f32.mxu0 0.0
        %813 = vmatmul.mubr.f32.gmra.mrb[0].mxu0 %v735
        %v814 = vpop.f32.mrb[0].mxu0
        %v815 = vadd.f32 0.0, %v814
        %v816 = vpop.f32.mrb[0].mxu0
        %817 = vdwg.mxu0
        %v818 = vmul.f32 %v723, -10.0
        %v819 = vmul.f32 %v728, -10.0
        %v820 = vmul.f32 %v810, -10.0
        %v821 = vmul.f32 %v815, -10.0
        %vm822 = vcmask 130048
        %v823 = vsel %vm822, %v818, -inf
        %824 = vmax.xlane.f32.xlu0 %v823
        %v825 = vpop.xlane.xlu0 %824
        %v826 = vsel %vm822, %v819, -inf
        %827 = vmax.xlane.f32.xlu0 %v826
        %v828 = vpop.xlane.xlu0 %827
        %v829 = vsel %vm822, %v820, -inf
        %830 = vmax.xlane.f32.xlu0 %v829
        %v831 = vpop.xlane.xlu0 %830
        %v832 = vsel %vm822, %v821, -inf
        %833 = vmax.xlane.f32.xlu0 %v832
        %v834 = vpop.xlane.xlu0 %833
        %v835 = vsub.f32 %v818, %v825
        %v836 = vsub.f32 %v819, %v828
        %v837 = vsub.f32 %v820, %v831
        %v838 = vsub.f32 %v821, %v834
        %v839 = vmul.f32 %v835, 1.442695
        %v840 = vpow.pop %v839
        %v841 = vmul.f32 %v836, 1.442695
        %v842 = vpow.pop %v841
        %v843 = vmul.f32 %v837, 1.442695
        %v844 = vpow.pop %v843
        %v845 = vmul.f32 %v838, 1.442695
        %v846 = vpow.pop %v845
        %v847 = vsel %vm822, %v840, 0.0
        %848 = vadd.xlane.f32.xlu0 %v847
        %v849 = vpop.xlane.xlu0 %848
        %v850 = vsel %vm822, %v842, 0.0
        %851 = vadd.xlane.f32.xlu0 %v850
        %v852 = vpop.xlane.xlu0 %851
        %v853 = vsel %vm822, %v844, 0.0
        %854 = vadd.xlane.f32.xlu0 %v853
        %v855 = vpop.xlane.xlu0 %854
        %v856 = vsel %vm822, %v846, 0.0
        %857 = vadd.xlane.f32.xlu0 %v856
        %v858 = vpop.xlane.xlu0 %857
        %v859 = vrcp.pop %v849
        %v860 = vmul.f32 %v840, %v859
        %v861 = vrcp.pop %v852
        %v862 = vmul.f32 %v842, %v861
        %v863 = vrcp.pop %v855
        %v864 = vmul.f32 %v844, %v863
        %v865 = vrcp.pop %v858
        %v866 = vmul.f32 %v846, %v865
        %v867 = vsel %vm822, %v860, 0.0
        %v868 = vsel %vm822, %v862, 0.0
        %v869 = vadd.f32 %v867, %v868
        %v870 = vrot.slane %v869, 4
        %v871 = vadd.f32 %v869, %v870
        %v872 = vrot.slane %v871, 2
        %v873 = vadd.f32 %v871, %v872
        %v874 = vrot.slane %v873, 1
        %v875 = vadd.f32 %v873, %v874
        %v876 = vsel %vm822, %v864, 0.0
        %v877 = vsel %vm822, %v866, 0.0
        %v878 = vadd.f32 %v876, %v877
        %v879 = vrot.slane %v878, 4
        %v880 = vadd.f32 %v878, %v879
        %v881 = vrot.slane %v880, 2
        %v882 = vadd.f32 %v880, %v881
        %v883 = vrot.slane %v882, 1
        %v884 = vadd.f32 %v882, %v883
        %v885 = vrcp.pop %v875
        %v886 = vmul.f32 %v860, %v885
        %v887 = vmul.f32 %v862, %v885
        %v888 = vrcp.pop %v884
        %v889 = vmul.f32 %v864, %v888
        %v890 = vmul.f32 %v866, %v888
        %v891 = vsel %vm822, %v886, 0.0
        %892 = vadd.xlane.f32.xlu0 %v891
        %v893 = vpop.xlane.xlu0 %892
        %v894 = vsel %vm822, %v887, 0.0
        %895 = vadd.xlane.f32.xlu0 %v894
        %v896 = vpop.xlane.xlu0 %895
        %v897 = vsel %vm822, %v889, 0.0
        %898 = vadd.xlane.f32.xlu0 %v897
        %v899 = vpop.xlane.xlu0 %898
        %v900 = vsel %vm822, %v890, 0.0
        %901 = vadd.xlane.f32.xlu0 %v900
        %v902 = vpop.xlane.xlu0 %901
        %v903 = vrcp.pop %v893
        %v904 = vmul.f32 %v886, %v903
        %v905 = vrcp.pop %v896
        %v906 = vmul.f32 %v887, %v905
        %v907 = vrcp.pop %v899
        %v908 = vmul.f32 %v889, %v907
        %v909 = vrcp.pop %v902
        %v910 = vmul.f32 %v890, %v909
        %v911 = vsel %vm822, %v904, 0.0
        %v912 = vsel %vm822, %v906, 0.0
        %v913 = vadd.f32 %v911, %v912
        %v914 = vrot.slane %v913, 4
        %v915 = vadd.f32 %v913, %v914
        %v916 = vrot.slane %v915, 2
        %v917 = vadd.f32 %v915, %v916
        %v918 = vrot.slane %v917, 1
        %v919 = vadd.f32 %v917, %v918
        %v920 = vsel %vm822, %v908, 0.0
        %v921 = vsel %vm822, %v910, 0.0
        %v922 = vadd.f32 %v920, %v921
        %v923 = vrot.slane %v922, 4
        %v924 = vadd.f32 %v922, %v923
        %v925 = vrot.slane %v924, 2
        %v926 = vadd.f32 %v924, %v925
        %v927 = vrot.slane %v926, 1
        %v928 = vadd.f32 %v926, %v927
        %v929 = vrcp.pop %v919
        %v930 = vmul.f32 %v904, %v929
        %v931 = vmul.f32 %v906, %v929
        %v932 = vrcp.pop %v928
        %v933 = vmul.f32 %v908, %v932
        %v934 = vmul.f32 %v910, %v932
        %v935 = vsel %vm822, %v930, 0.0
        %936 = vadd.xlane.f32.xlu0 %v935
        %v937 = vpop.xlane.xlu0 %936
        %v938 = vsel %vm822, %v931, 0.0
        %939 = vadd.xlane.f32.xlu0 %v938
        %v940 = vpop.xlane.xlu0 %939
        %v941 = vsel %vm822, %v933, 0.0
        %942 = vadd.xlane.f32.xlu0 %v941
        %v943 = vpop.xlane.xlu0 %942
        %v944 = vsel %vm822, %v934, 0.0
        %945 = vadd.xlane.f32.xlu0 %v944
        %v946 = vpop.xlane.xlu0 %945
        %v947 = vrcp.pop %v937
        %v948 = vmul.f32 %v930, %v947
        %v949 = vrcp.pop %v940
        %v950 = vmul.f32 %v931, %v949
        %v951 = vrcp.pop %v943
        %v952 = vmul.f32 %v933, %v951
        %v953 = vrcp.pop %v946
        %v954 = vmul.f32 %v934, %v953
        %v955 = vsel %vm822, %v948, 0.0
        %v956 = vsel %vm822, %v950, 0.0
        %v957 = vadd.f32 %v955, %v956
        %v958 = vrot.slane %v957, 4
        %v959 = vadd.f32 %v957, %v958
        %v960 = vrot.slane %v959, 2
        %v961 = vadd.f32 %v959, %v960
        %v962 = vrot.slane %v961, 1
        %v963 = vadd.f32 %v961, %v962
        %v964 = vsel %vm822, %v952, 0.0
        %v965 = vsel %vm822, %v954, 0.0
        %v966 = vadd.f32 %v964, %v965
        %v967 = vrot.slane %v966, 4
        %v968 = vadd.f32 %v966, %v967
        %v969 = vrot.slane %v968, 2
        %v970 = vadd.f32 %v968, %v969
        %v971 = vrot.slane %v970, 1
        %v972 = vadd.f32 %v970, %v971
        %v973 = vrcp.pop %v963
        %v974 = vmul.f32 %v948, %v973
        %v975 = vmul.f32 %v950, %v973
        %v976 = vrcp.pop %v972
        %v977 = vmul.f32 %v952, %v976
        %v978 = vmul.f32 %v954, %v976
        %v979 = vsel %vm822, %v974, 0.0
        %980 = vadd.xlane.f32.xlu0 %v979
        %v981 = vpop.xlane.xlu0 %980
        %v982 = vsel %vm822, %v975, 0.0
        %983 = vadd.xlane.f32.xlu0 %v982
        %v984 = vpop.xlane.xlu0 %983
        %v985 = vsel %vm822, %v977, 0.0
        %986 = vadd.xlane.f32.xlu0 %v985
        %v987 = vpop.xlane.xlu0 %986
        %v988 = vsel %vm822, %v978, 0.0
        %989 = vadd.xlane.f32.xlu0 %v988
        %v990 = vpop.xlane.xlu0 %989
        %v991 = vrcp.pop %v981
        %v992 = vmul.f32 %v974, %v991
        %v993 = vrcp.pop %v984
        %v994 = vmul.f32 %v975, %v993
        %v995 = vrcp.pop %v987
        %v996 = vmul.f32 %v977, %v995
        %v997 = vrcp.pop %v990
        %v998 = vmul.f32 %v978, %v997
        %v999 = vsel %vm822, %v992, 0.0
        %v1000 = vsel %vm822, %v994, 0.0
        %v1001 = vadd.f32 %v999, %v1000
        %v1002 = vrot.slane %v1001, 4
        %v1003 = vadd.f32 %v1001, %v1002
        %v1004 = vrot.slane %v1003, 2
        %v1005 = vadd.f32 %v1003, %v1004
        %v1006 = vrot.slane %v1005, 1
        %v1007 = vadd.f32 %v1005, %v1006
        %v1008 = vsel %vm822, %v996, 0.0
        %v1009 = vsel %vm822, %v998, 0.0
        %v1010 = vadd.f32 %v1008, %v1009
        %v1011 = vrot.slane %v1010, 4
        %v1012 = vadd.f32 %v1010, %v1011
        %v1013 = vrot.slane %v1012, 2
        %v1014 = vadd.f32 %v1012, %v1013
        %v1015 = vrot.slane %v1014, 1
        %v1016 = vadd.f32 %v1014, %v1015
        %v1017 = vrcp.pop %v1007
        %v1018 = vmul.f32 %v992, %v1017
        %v1019 = vmul.f32 %v994, %v1017
        %v1020 = vrcp.pop %v1016
        %v1021 = vmul.f32 %v996, %v1020
        %v1022 = vmul.f32 %v998, %v1020
        %v1023 = vsel %vm822, %v1018, 0.0
        %1024 = vadd.xlane.f32.xlu0 %v1023
        %v1025 = vpop.xlane.xlu0 %1024
        %v1026 = vsel %vm822, %v1019, 0.0
        %1027 = vadd.xlane.f32.xlu0 %v1026
        %v1028 = vpop.xlane.xlu0 %1027
        %v1029 = vsel %vm822, %v1021, 0.0
        %1030 = vadd.xlane.f32.xlu0 %v1029
        %v1031 = vpop.xlane.xlu0 %1030
        %v1032 = vsel %vm822, %v1022, 0.0
        %1033 = vadd.xlane.f32.xlu0 %v1032
        %v1034 = vpop.xlane.xlu0 %1033
        %v1035 = vrcp.pop %v1025
        %v1036 = vmul.f32 %v1018, %v1035
        %v1037 = vrcp.pop %v1028
        %v1038 = vmul.f32 %v1019, %v1037
        %v1039 = vrcp.pop %v1031
        %v1040 = vmul.f32 %v1021, %v1039
        %v1041 = vrcp.pop %v1034
        %v1042 = vmul.f32 %v1022, %v1041
        %v1043 = vsel %vm822, %v1036, 0.0
        %v1044 = vsel %vm822, %v1038, 0.0
        %v1045 = vadd.f32 %v1043, %v1044
        %v1046 = vrot.slane %v1045, 4
        %v1047 = vadd.f32 %v1045, %v1046
        %v1048 = vrot.slane %v1047, 2
        %v1049 = vadd.f32 %v1047, %v1048
        %v1050 = vrot.slane %v1049, 1
        %v1051 = vadd.f32 %v1049, %v1050
        %v1052 = vsel %vm822, %v1040, 0.0
        %v1053 = vsel %vm822, %v1042, 0.0
        %v1054 = vadd.f32 %v1052, %v1053
        %v1055 = vrot.slane %v1054, 4
        %v1056 = vadd.f32 %v1054, %v1055
        %v1057 = vrot.slane %v1056, 2
        %v1058 = vadd.f32 %v1056, %v1057
        %v1059 = vrot.slane %v1058, 1
        %v1060 = vadd.f32 %v1058, %v1059
        %v1061 = vrcp.pop %v1051
        %v1062 = vmul.f32 %v1036, %v1061
        %v1063 = vmul.f32 %v1038, %v1061
        %v1064 = vrcp.pop %v1060
        %v1065 = vmul.f32 %v1040, %v1064
        %v1066 = vmul.f32 %v1042, %v1064
        %v1067 = vmul.f32 %v1062, %v1062
        %v1068 = vmul.f32 %v1063, %v1063
        %v1069 = vmul.f32 %v1065, %v1065
        %v1070 = vmul.f32 %v1066, %v1066
        %v1071 = vsel %vm822, %v1067, 0.0
        %1072 = vadd.xlane.f32.xlu0 %v1071
        %v1073 = vpop.xlane.xlu0 %1072
        %v1074 = vsel %vm822, %v1068, 0.0
        %1075 = vadd.xlane.f32.xlu0 %v1074
        %v1076 = vpop.xlane.xlu0 %1075
        %v1077 = vsel %vm822, %v1069, 0.0
        %1078 = vadd.xlane.f32.xlu0 %v1077
        %v1079 = vpop.xlane.xlu0 %1078
        %v1080 = vsel %vm822, %v1070, 0.0
        %1081 = vadd.xlane.f32.xlu0 %v1080
        %v1082 = vpop.xlane.xlu0 %1081
        %v1083 = vmax.f32 %v1073, 1e-24
        %v1084 = vmax.f32 %v1076, 1e-24
        %v1085 = vmax.f32 %v1079, 1e-24
        %v1086 = vmax.f32 %v1082, 1e-24
        %v1087 = vrsqrt.pop %v1083
        %v1088 = vrsqrt.pop %v1084
        %v1089 = vrsqrt.pop %v1085
        %v1090 = vrsqrt.pop %v1086
        %v1091 = vmul.f32 %v1062, %v1087
        %v1092 = vmul.f32 %v1063, %v1088
        %v1093 = vmul.f32 %v1065, %v1089
        %v1094 = vmul.f32 %v1066, %v1090
        %v1095 = vpack.c.bf16 %v576, %v573
        %v1096 = vpack.c.bf16 %v584, %v581
        %v1097 = vpack.c.bf16 %v1092, %v1091
        %v1098 = vpack.c.bf16 %v1094, %v1093
        %1100 = vrot.lane.b32.xlu0 %v1095, 96
        %v1101 = vpop.permute.xlu0 %1100
        %v1104 = vsel %vm822, %v1097, 0
        %1106 = vmatprep.subr.bf16.mxu0 0
        %1107 = vmatpush1.bf16.msra.mxu0 %v1101
        %1108 = vmatprep.subr.bf16.mxu0 0
        %1109 = vmatpush1.bf16.msra.mxu0 0
        %1110 = vmatprep.subr.bf16.mxu0 0
        %1111 = vmatpush1.bf16.msra.mxu0 0
        %1112 = vmatprep.subr.bf16.mxu0 0
        %1113 = vmatpush1.bf16.msra.mxu0 0
        %1114 = vmatprep.subr.bf16.mxu0 0
        %1115 = vmatpush1.bf16.msra.mxu0 0
        %1116 = vmatprep.subr.bf16.mxu0 0
        %1117 = vmatpush1.bf16.msra.mxu0 0
        %1118 = vmatprep.subr.bf16.mxu0 0
        %1119 = vmatpush1.bf16.msra.mxu0 0
        %1120 = vmatprep.subr.bf16.mxu0 0
        %1121 = vmatpush1.bf16.msra.mxu0 0
        %1122 = vmatprep.subr.bf16.mxu0 0
        %1123 = vmatpush1.bf16.msra.mxu0 0
        %1124 = vmatprep.subr.bf16.mxu0 0
        %1125 = vmatpush1.bf16.msra.mxu0 0
        %1126 = vmatprep.subr.bf16.mxu0 0
        %1127 = vmatpush1.bf16.msra.mxu0 0
        %1128 = vmatprep.subr.bf16.mxu0 0
        %1129 = vmatpush1.bf16.msra.mxu0 0
        %1130 = vmatprep.subr.bf16.mxu0 0
        %1131 = vmatpush1.bf16.msra.mxu0 0
        %1132 = vmatprep.subr.bf16.mxu0 0
        %1133 = vmatpush1.bf16.msra.mxu0 0
        %1134 = vmatprep.subr.bf16.mxu0 0
        %1135 = vmatpush1.bf16.msra.mxu0 0
        %1136 = vmatprep.subr.bf16.mxu0 0
        %1137 = vmatpush1.bf16.msra.mxu0 0
        %1138 = vmatprep.mubr.bf16.mxu0 0
        %1139 = vmatmul.mubr.bf16.gmra.mrb[0].mxu0 %v1104
        %v1140 = vpop.f32.mrb[0].mxu0
        %v1141 = vadd.f32 %v469, %v1140
        %v1142 = vpop.f32.mrb[0].mxu0
        %v1143 = vpop.f32.mrb[0].mxu0
        %v1144 = vadd.f32 %v472, %v1143
        %v1145 = vpop.f32.mrb[0].mxu0
        %1146 = vdwg.mxu0
        %1148 = vrot.lane.b32.xlu0 %v1096, 96
        %v1149 = vpop.permute.xlu0 %1148
        %v1152 = vsel %vm822, %v1098, 0
        %1154 = vmatprep.subr.bf16.mxu0 0
        %1155 = vmatpush1.bf16.msra.mxu0 %v1149
        %1156 = vmatprep.subr.bf16.mxu0 0
        %1157 = vmatpush1.bf16.msra.mxu0 0
        %1158 = vmatprep.subr.bf16.mxu0 0
        %1159 = vmatpush1.bf16.msra.mxu0 0
        %1160 = vmatprep.subr.bf16.mxu0 0
        %1161 = vmatpush1.bf16.msra.mxu0 0
        %1162 = vmatprep.subr.bf16.mxu0 0
        %1163 = vmatpush1.bf16.msra.mxu0 0
        %1164 = vmatprep.subr.bf16.mxu0 0
        %1165 = vmatpush1.bf16.msra.mxu0 0
        %1166 = vmatprep.subr.bf16.mxu0 0
        %1167 = vmatpush1.bf16.msra.mxu0 0
        %1168 = vmatprep.subr.bf16.mxu0 0
        %1169 = vmatpush1.bf16.msra.mxu0 0
        %1170 = vmatprep.subr.bf16.mxu0 0
        %1171 = vmatpush1.bf16.msra.mxu0 0
        %1172 = vmatprep.subr.bf16.mxu0 0
        %1173 = vmatpush1.bf16.msra.mxu0 0
        %1174 = vmatprep.subr.bf16.mxu0 0
        %1175 = vmatpush1.bf16.msra.mxu0 0
        %1176 = vmatprep.subr.bf16.mxu0 0
        %1177 = vmatpush1.bf16.msra.mxu0 0
        %1178 = vmatprep.subr.bf16.mxu0 0
        %1179 = vmatpush1.bf16.msra.mxu0 0
        %1180 = vmatprep.subr.bf16.mxu0 0
        %1181 = vmatpush1.bf16.msra.mxu0 0
        %1182 = vmatprep.subr.bf16.mxu0 0
        %1183 = vmatpush1.bf16.msra.mxu0 0
        %1184 = vmatprep.subr.bf16.mxu0 0
        %1185 = vmatpush1.bf16.msra.mxu0 0
        %1186 = vmatprep.mubr.bf16.mxu0 0
        %1187 = vmatmul.mubr.bf16.gmra.mrb[0].mxu0 %v1152
        %v1188 = vpop.f32.mrb[0].mxu0
        %v1189 = vadd.f32 %v477, %v1188
        %v1190 = vpop.f32.mrb[0].mxu0
        %v1191 = vpop.f32.mrb[0].mxu0
        %v1192 = vadd.f32 %v480, %v1191
        %v1193 = vpop.f32.mrb[0].mxu0
        %1194 = vdwg.mxu0
        %v1195 = vsel %vm591, %v1141, 0.0
        %1196 = vadd.xlane.f32.xlu0 %v1195
        %v1197 = vpop.xlane.xlu0 %1196
        %v1198 = vsel %vm591, %v1144, 0.0
        %1199 = vadd.xlane.f32.xlu0 %v1198
        %v1200 = vpop.xlane.xlu0 %1199
        %v1201 = vsel %vm591, %v1189, 0.0
        %1202 = vadd.xlane.f32.xlu0 %v1201
        %v1203 = vpop.xlane.xlu0 %1202
        %v1204 = vsel %vm591, %v1192, 0.0
        %1205 = vadd.xlane.f32.xlu0 %v1204
        %v1206 = vpop.xlane.xlu0 %1205
        %v1207 = vrcp.pop 32.0
        %v1208 = vmul.f32 %v1197, %v1207
        %v1209 = vmul.f32 %v1200, %v1207
        %v1210 = vmul.f32 %v1203, %v1207
        %v1211 = vmul.f32 %v1206, %v1207
        %v1212 = vsub.f32 %v1141, %v1208
        %v1213 = vsub.f32 %v1144, %v1209
        %v1214 = vsub.f32 %v1189, %v1210
        %v1215 = vsub.f32 %v1192, %v1211
        %v1216 = vmul.f32 %v1212, %v1212
        %v1217 = vmul.f32 %v1213, %v1213
        %v1218 = vmul.f32 %v1214, %v1214
        %v1219 = vmul.f32 %v1215, %v1215
        %v1220 = vsel %vm591, %v1216, 0.0
        %1221 = vadd.xlane.f32.xlu0 %v1220
        %v1222 = vpop.xlane.xlu0 %1221
        %v1223 = vsel %vm591, %v1217, 0.0
        %1224 = vadd.xlane.f32.xlu0 %v1223
        %v1225 = vpop.xlane.xlu0 %1224
        %v1226 = vsel %vm591, %v1218, 0.0
        %1227 = vadd.xlane.f32.xlu0 %v1226
        %v1228 = vpop.xlane.xlu0 %1227
        %v1229 = vsel %vm591, %v1219, 0.0
        %1230 = vadd.xlane.f32.xlu0 %v1229
        %v1231 = vpop.xlane.xlu0 %1230
        %v1232 = vmul.f32 %v1222, %v1207
        %v1233 = vmul.f32 %v1225, %v1207
        %v1234 = vmul.f32 %v1228, %v1207
        %v1235 = vmul.f32 %v1231, %v1207
        %v1236 = vadd.f32 %v1232, 1e-05
        %v1237 = vadd.f32 %v1233, 1e-05
        %v1238 = vadd.f32 %v1234, 1e-05
        %v1239 = vadd.f32 %v1235, 1e-05
        %v1240 = vrsqrt.pop %v1236
        %v1241 = vrsqrt.pop %v1237
        %v1242 = vrsqrt.pop %v1238
        %v1243 = vrsqrt.pop %v1239
        %v1244 = vmul.f32 %v1212, %v1240
        %v1245 = vmul.f32 %v1213, %v1241
        %v1246 = vmul.f32 %v1214, %v1242
        %v1247 = vmul.f32 %v1215, %v1243
        %v1248 = vld [vmem:[%s6] sm:$0x1]
        %v1250 = vlaneseq
        %v1251 = vshrl.u32 %v1250, 7
        %v1252 = vsub.s32 0, %v1251
        %v1253 = vrot.slane %v1248, %v1252
        %v1255 = vmul.f32 %v1244, %v1253
        %v1256 = vmul.f32 %v1245, %v1253
        %v1257 = vmul.f32 %v1246, %v1253
        %v1258 = vmul.f32 %v1247, %v1253
        %v1259 = vld [vmem:[%s7] sm:$0x1]
        %v1261 = vlaneseq
        %v1262 = vshrl.u32 %v1261, 7
        %v1263 = vsub.s32 0, %v1262
        %v1264 = vrot.slane %v1259, %v1263
        %v1266 = vadd.f32 %v1255, %v1264
        %v1267 = vadd.f32 %v1256, %v1264
        %v1268 = vadd.f32 %v1257, %v1264
        %v1269 = vadd.f32 %v1258, %v1264
        %1270 = vst.msk [vmem:[%s365] sm:$0xff] %vm591, %v1266
        %1271 = vst.msk [vmem:[%s365 + $0x8] sm:$0xff] %vm591, %v1267
        %1272 = vst.msk [vmem:[%s365 + $0x10] sm:$0xff] %vm591, %v1268
        %1273 = vst.msk [vmem:[%s365 + $0x18] sm:$0xff] %vm591, %v1269
        %s1274 = sand.u32 %s214, 1
        %s1275 = scalar_lea.sflag [#allocation4], %s1274
        %s1276 = sand.u32 %s214, 1
        %s1277 = smul.addr %s1276, 32
        %s1278 = scalar_lea.vmem [#allocation7], %s1277
        // Predicated region
        $region61: #{tpu_custom_call.1} parent=51 // pred_check
          %p1279 = pneg %p224
        $region62: #{tpu_custom_call.1} parent=51 // pred_check_branch
          %1281 = sbr.rel (%p1279) target = $region64
        $region63: #{tpu_custom_call.1} parent=51 // pred_region
          %s1282 = smul.u32 2, %s28
          %s1284 = ssub.s32 512, 512
          %1285 = vsyncadd %s1275, %s1284
          %s1286 = smul.addr %s1282, 2
          %s1287 = smul.addr %s1286, 128
          %s1288 = scalar_lea.hbm %s8, %s1287
          %s1289 = sshll.u32 %s1278, 4
          %s1290 = int_to_ptr.vmem [resolvable:$true] %s1289
          %1295 = dma.vmem_to_hbm [thread:$0]  %s1290, 512, %s1288, %s1275, 128, 128, 8
        $region64: #{tpu_custom_call.1} parent=51 // pred_fallthru
          _
      $region52: #{tpu_custom_call.1} parent=5 // pred_fallthru
        _
      %p1296 = scmp.le.s32.totalorder 2, %s23
      // Predicated region
      $region65: #{tpu_custom_call.1} parent=5 // pred_check
        %p1297 = pneg %p1296
      $region66: #{tpu_custom_call.1} parent=5 // pred_check_branch
        %1299 = sbr.rel (%p1297) target = $region68
      $region67: #{tpu_custom_call.1} parent=5 // pred_region
        %s1300 = ssub.s32 %s23, 2
        // Predicated region
        $region69: #{tpu_custom_call.1} parent=67 // pred_check
          %p1301 = pneg %p230
        $region70: #{tpu_custom_call.1} parent=67 // pred_check_branch
          %1303 = sbr.rel (%p1301) target = $region72
        $region71: #{tpu_custom_call.1} parent=67 // pred_region
          %s1304 = sand.u32 %s215, 1
          %s1305 = scalar_lea.sflag [#allocation4], %s1304
          %s1306 = sand.u32 %s215, 1
          %s1307 = smul.addr %s1306, 32
          %s1308 = scalar_lea.vmem [#allocation7], %s1307
          %1309 = dma.done %s1305, 512
        $region72: #{tpu_custom_call.1} parent=67 // pred_fallthru
          _
      $region68: #{tpu_custom_call.1} parent=5 // pred_fallthru
        _
    $region6: #{tpu_custom_call.1} parent=1 // loop_footer
      %s27 = sadd.s32 1, %s23
    $region7: #{tpu_custom_call.1} parent=1 // loop_footer_branch
      %22 = sbr.rel target = $region3
    $region8: #{tpu_custom_call.1} parent=1 // loop_exit
      _
    %1310 = vsyncpa [#allocation3], 1
    %s1311 = scalar_lea.sflag [#allocation3], 1
    %1312 = vsyncpa %s1311, 1
    %1313 = vsyncpa [#allocation6], 1
    %s1314 = scalar_lea.sflag [#allocation6], 1
    %1315 = vsyncpa %s1314, 1
    %1316 = vsyncpa [#allocation4], 1
    %s1317 = scalar_lea.sflag [#allocation4], 1
    %1318 = vsyncpa %s1317, 1

</llo_original>
